<compile_context>
chip_gen: v6e
topology: v6e:2x2x1
jax: 0.10.0
libtpu: 0.0.40
codegen_flags: <defaults>
</compile_context>

<pallas_src>
import jax
import jax.numpy as jnp
from jax import lax
from jax.experimental import pallas as pl
from jax.experimental.pallas import tpu as pltpu


def _round_up(x, m):
    return ((x + m - 1) // m) * m


def _make_conv_kernel(shifts, cin_p, s_out):
    """Build the fused im2col + matmul kernel (all closure args are Python ints)."""

    def kernel(x_ref, w_ref, o_ref, p_ref):
        # Fused im2col: each conv tap (kd, kh, kw) is a static lane-shifted
        # window of the flattened input; copy it into its 8-row block of the
        # patch scratch (sublane offsets are multiples of 8 -> aligned stores).
        for k, sh in enumerate(shifts):
            p_ref[k * cin_p:(k + 1) * cin_p, :] = x_ref[:, sh:sh + s_out]
        # One lane-dense MXU matmul; the bias rides on the constant-ones input
        # row (folded into the weights), so no extra operand / broadcast add.
        o_ref[...] = jnp.dot(w_ref[...], p_ref[...],
                             preferred_element_type=jnp.float32)

    return kernel


@jax.jit
def conv3d_pallas(x, w, b):
    """x: (N, Cin, D, H, W) f32; w: (Cout, Cin, KD, KH, KW) f32; b: (Cout,) f32."""
    N, Cin, D, H, W = x.shape
    Cout, _, KD, KH, KW = w.shape
    Do, Ho, Wo = D - KD + 1, H - KH + 1, W - KW + 1   # stride=1, pad=0, dil=1

    S = N * D * H * W                 # full-grid output lanes (cropped afterwards)
    KT = KD * KH * KW                 # number of conv taps (27)
    Cin_p = _round_up(Cin + 1, 8)     # +1 constant-ones row carries the bias
    Cout_p = _round_up(Cout, 8)       # Cout lives on the sublane axis
    Kp = KT * Cin_p                   # contraction dim of the fused matmul

    # Flat-index shift per tap: (n, d, h, w) -> n*DHW + d*HW + h*W + w, and
    # (d+kd, h+kh, w+kw) has no carries for valid output positions, so the tap
    # is exactly a lane shift of kd*HW + kh*W + kw.
    shifts = tuple(kd * H * W + kh * W + kw
                   for kd in range(KD) for kh in range(KH) for kw in range(KW))
    max_shift = shifts[-1]
    Lpad = _round_up(S + max_shift, 128)   # lane slack so every shifted window fits

    # ---- input layout: (Cin_p, Lpad); rows = cin (+ ones row), lanes = (n,d,h,w)
    x_rows = x.astype(jnp.float32).transpose(1, 0, 2, 3, 4).reshape(Cin, S)
    x_rows = jnp.pad(x_rows, ((0, 0), (0, Lpad - S)))
    ones_row = jnp.ones((1, Lpad), jnp.float32)                 # bias carrier
    zero_rows = jnp.zeros((Cin_p - Cin - 1, Lpad), jnp.float32)
    x_flat = jnp.concatenate([x_rows, ones_row, zero_rows], axis=0)

    # ---- weight layout: (Cout_p, KT*Cin_p), matching the patch-scratch row order
    w_k = w.astype(jnp.float32).transpose(2, 3, 4, 0, 1).reshape(KT, Cout, Cin)
    w_pad = jnp.zeros((KT, Cout_p, Cin_p), jnp.float32)
    w_pad = w_pad.at[:, :Cout, :Cin].set(w_k)
    w_pad = w_pad.at[0, :Cout, Cin].set(b.astype(jnp.float32))  # bias on ones row
    w_mat = w_pad.transpose(1, 0, 2).reshape(Cout_p, Kp)

    cost = pl.CostEstimate(
        flops=2 * Cout_p * Kp * S,
        transcendentals=0,
        bytes_accessed=x_flat.size * 4 + w_mat.size * 4 + Cout_p * S * 4,
    )

    kernel = _make_conv_kernel(shifts, Cin_p, S)

    # Single grid step: the whole problem (~1 MB of VMEM incl. the patch
    # scratch) fits comfortably under every generation's scoped-VMEM default,
    # and one step avoids per-step pipeline overhead.  For much larger M,
    # tile the lane axis instead and set vmem_limit_bytes explicitly.
    out_full = pl.pallas_call(
        kernel,
        out_shape=jax.ShapeDtypeStruct((Cout_p, S), jnp.float32),
        grid_spec=pltpu.PrefetchScalarGridSpec(
            num_scalar_prefetch=0,
            grid=(1,),
            in_specs=[
                pl.BlockSpec((Cin_p, Lpad), lambda i: (0, 0)),   # input slab
                pl.BlockSpec((Cout_p, Kp), lambda i: (0, 0)),    # weights (+bias)
            ],
            out_specs=pl.BlockSpec((Cout_p, S), lambda i: (0, 0)),
            scratch_shapes=[pltpu.VMEM((Kp, S), jnp.float32)],   # im2col patches
        ),
        compiler_params=pltpu.CompilerParams(
            dimension_semantics=("arbitrary",),
        ),
        cost_estimate=cost,
    )(x_flat, w_mat)

    # ---- crop the full-grid result to valid positions and restore NCDHW ----
    out = out_full[:Cout].reshape(Cout, N, D, H, W)[:, :, :Do, :Ho, :Wo]
    return out.transpose(1, 0, 2, 3, 4)


def _reference_conv3d(x, w, b):
    out = lax.conv_general_dilated(
        x, w,
        window_strides=(1, 1, 1),
        padding="VALID",
        dimension_numbers=("NCDHW", "OIDHW", "NCDHW"),
        precision=lax.Precision.HIGHEST,
    )
    return out + b.reshape(1, -1, 1, 1, 1)


if __name__ == "__main__":
    # Small shapes consistent with the module: N=2, Cin=3, Cout=6, D=H=W=8.
    N, Cin, Cout = 2, 3, 6
    KD = KH = KW = 3
    D = H = W = 8

    key = jax.random.PRNGKey(0)
    kx, kw_, kb = jax.random.split(key, 3)

    x = jax.random.normal(kx, (N, Cin, D, H, W), dtype=jnp.float32)

    # Deterministic PyTorch-style Conv3d init: U(-1/sqrt(fan_in), 1/sqrt(fan_in))
    fan_in = Cin * KD * KH * KW
    bound = 1.0 / (fan_in ** 0.5)
    w = jax.random.uniform(kw_, (Cout, Cin, KD, KH, KW),
                           minval=-bound, maxval=bound, dtype=jnp.float32)
    b = jax.random.uniform(kb, (Cout,),
                           minval=-bound, maxval=bound, dtype=jnp.float32)

    out = conv3d_pallas(x, w, b)
    out = jax.block_until_ready(out)

    ref = _reference_conv3d(x, w, b)
    assert out.shape == ref.shape == (N, Cout, D - 2, H - 2, W - 2)
    # f32 operands with f32 accumulation; tolerance only needs to cover MXU
    # pass rounding (no bf16 input truncation anymore).
    assert jnp.allclose(out, ref, atol=2e-2, rtol=2e-2), "mismatch vs reference"

    print("KERNEL_OK")
</pallas_src>

<mosaic_0001>
module attributes {stable_mosaic.version = 11 : i64} {
  func.func @kernel(%arg0: i32, %arg1: memref<8x1280xf32, #tpu.memory_space<vmem>>, %arg2: memref<8x216xf32, #tpu.memory_space<vmem>>, %arg3: memref<8x1024xf32, #tpu.memory_space<vmem>>, %arg4: memref<216x1024xf32, #tpu.memory_space<vmem>>) attributes {dimension_semantics = [#tpu.dimension_semantics<arbitrary>], iteration_bounds = array<i64: 1>, scalar_prefetch = 0 : i64, scratch_operands = 1 : i64, tpu.core_type = #tpu.core_type<tc>, window_params = [{pipeline_mode = #tpu.pipeline_mode<synchronous>, transform_indices = @transform_0, window_bounds = array<i64: 8, 1280>}, {pipeline_mode = #tpu.pipeline_mode<synchronous>, transform_indices = @transform_1, window_bounds = array<i64: 8, 216>}, {pipeline_mode = #tpu.pipeline_mode<synchronous>, transform_indices = @transform_2, window_bounds = array<i64: 8, 1024>}]} {
    %c0 = arith.constant 0 : index
    %c0_0 = arith.constant 0 : index
    %0 = vector.load %arg1[%c0, %c0_0] : memref<8x1280xf32, #tpu.memory_space<vmem>>, vector<8x1024xf32>
    %c0_1 = arith.constant 0 : index
    %c0_2 = arith.constant 0 : index
    %1 = vector.load %arg4[%c0_1, %c0_2] : memref<216x1024xf32, #tpu.memory_space<vmem>>, vector<8x1024xf32>
    tpu.vector_store %arg4[%c0_1, %c0_2], %0 {strides = array<i32>} : memref<216x1024xf32, #tpu.memory_space<vmem>>, vector<8x1024xf32>,
    %c0_3 = arith.constant 0 : index
    %c1 = arith.constant 1 : index
    %2 = vector.load %arg1[%c0_3, %c1] : memref<8x1280xf32, #tpu.memory_space<vmem>>, vector<8x1024xf32>
    %c8 = arith.constant 8 : index
    %c0_4 = arith.constant 0 : index
    %3 = vector.load %arg4[%c8, %c0_4] : memref<216x1024xf32, #tpu.memory_space<vmem>>, vector<8x1024xf32>
    tpu.vector_store %arg4[%c8, %c0_4], %2 {strides = array<i32>} : memref<216x1024xf32, #tpu.memory_space<vmem>>, vector<8x1024xf32>,
    %c0_5 = arith.constant 0 : index
    %c2 = arith.constant 2 : index
    %4 = vector.load %arg1[%c0_5, %c2] : memref<8x1280xf32, #tpu.memory_space<vmem>>, vector<8x1024xf32>
    %c16 = arith.constant 16 : index
    %c0_6 = arith.constant 0 : index
    %5 = vector.load %arg4[%c16, %c0_6] : memref<216x1024xf32, #tpu.memory_space<vmem>>, vector<8x1024xf32>
    tpu.vector_store %arg4[%c16, %c0_6], %4 {strides = array<i32>} : memref<216x1024xf32, #tpu.memory_space<vmem>>, vector<8x1024xf32>,
    %c0_7 = arith.constant 0 : index
    %c8_8 = arith.constant 8 : index
    %6 = vector.load %arg1[%c0_7, %c8_8] : memref<8x1280xf32, #tpu.memory_space<vmem>>, vector<8x1024xf32>
    %c24 = arith.constant 24 : index
    %c0_9 = arith.constant 0 : index
    %7 = vector.load %arg4[%c24, %c0_9] : memref<216x1024xf32, #tpu.memory_space<vmem>>, vector<8x1024xf32>
    tpu.vector_store %arg4[%c24, %c0_9], %6 {strides = array<i32>} : memref<216x1024xf32, #tpu.memory_space<vmem>>, vector<8x1024xf32>,
    %c0_10 = arith.constant 0 : index
    %c9 = arith.constant 9 : index
    %8 = vector.load %arg1[%c0_10, %c9] : memref<8x1280xf32, #tpu.memory_space<vmem>>, vector<8x1024xf32>
    %c32 = arith.constant 32 : index
    %c0_11 = arith.constant 0 : index
    %9 = vector.load %arg4[%c32, %c0_11] : memref<216x1024xf32, #tpu.memory_space<vmem>>, vector<8x1024xf32>
    tpu.vector_store %arg4[%c32, %c0_11], %8 {strides = array<i32>} : memref<216x1024xf32, #tpu.memory_space<vmem>>, vector<8x1024xf32>,
    %c0_12 = arith.constant 0 : index
    %c10 = arith.constant 10 : index
    %10 = vector.load %arg1[%c0_12, %c10] : memref<8x1280xf32, #tpu.memory_space<vmem>>, vector<8x1024xf32>
    %c40 = arith.constant 40 : index
    %c0_13 = arith.constant 0 : index
    %11 = vector.load %arg4[%c40, %c0_13] : memref<216x1024xf32, #tpu.memory_space<vmem>>, vector<8x1024xf32>
    tpu.vector_store %arg4[%c40, %c0_13], %10 {strides = array<i32>} : memref<216x1024xf32, #tpu.memory_space<vmem>>, vector<8x1024xf32>,
    %c0_14 = arith.constant 0 : index
    %c16_15 = arith.constant 16 : index
    %12 = vector.load %arg1[%c0_14, %c16_15] : memref<8x1280xf32, #tpu.memory_space<vmem>>, vector<8x1024xf32>
    %c48 = arith.constant 48 : index
    %c0_16 = arith.constant 0 : index
    %13 = vector.load %arg4[%c48, %c0_16] : memref<216x1024xf32, #tpu.memory_space<vmem>>, vector<8x1024xf32>
    tpu.vector_store %arg4[%c48, %c0_16], %12 {strides = array<i32>} : memref<216x1024xf32, #tpu.memory_space<vmem>>, vector<8x1024xf32>,
    %c0_17 = arith.constant 0 : index
    %c17 = arith.constant 17 : index
    %14 = vector.load %arg1[%c0_17, %c17] : memref<8x1280xf32, #tpu.memory_space<vmem>>, vector<8x1024xf32>
    %c56 = arith.constant 56 : index
    %c0_18 = arith.constant 0 : index
    %15 = vector.load %arg4[%c56, %c0_18] : memref<216x1024xf32, #tpu.memory_space<vmem>>, vector<8x1024xf32>
    tpu.vector_store %arg4[%c56, %c0_18], %14 {strides = array<i32>} : memref<216x1024xf32, #tpu.memory_space<vmem>>, vector<8x1024xf32>,
    %c0_19 = arith.constant 0 : index
    %c18 = arith.constant 18 : index
    %16 = vector.load %arg1[%c0_19, %c18] : memref<8x1280xf32, #tpu.memory_space<vmem>>, vector<8x1024xf32>
    %c64 = arith.constant 64 : index
    %c0_20 = arith.constant 0 : index
    %17 = vector.load %arg4[%c64, %c0_20] : memref<216x1024xf32, #tpu.memory_space<vmem>>, vector<8x1024xf32>
    tpu.vector_store %arg4[%c64, %c0_20], %16 {strides = array<i32>} : memref<216x1024xf32, #tpu.memory_space<vmem>>, vector<8x1024xf32>,
    %c0_21 = arith.constant 0 : index
    %c64_22 = arith.constant 64 : index
    %18 = vector.load %arg1[%c0_21, %c64_22] : memref<8x1280xf32, #tpu.memory_space<vmem>>, vector<8x1024xf32>
    %c72 = arith.constant 72 : index
    %c0_23 = arith.constant 0 : index
    %19 = vector.load %arg4[%c72, %c0_23] : memref<216x1024xf32, #tpu.memory_space<vmem>>, vector<8x1024xf32>
    tpu.vector_store %arg4[%c72, %c0_23], %18 {strides = array<i32>} : memref<216x1024xf32, #tpu.memory_space<vmem>>, vector<8x1024xf32>,
    %c0_24 = arith.constant 0 : index
    %c65 = arith.constant 65 : index
    %20 = vector.load %arg1[%c0_24, %c65] : memref<8x1280xf32, #tpu.memory_space<vmem>>, vector<8x1024xf32>
    %c80 = arith.constant 80 : index
    %c0_25 = arith.constant 0 : index
    %21 = vector.load %arg4[%c80, %c0_25] : memref<216x1024xf32, #tpu.memory_space<vmem>>, vector<8x1024xf32>
    tpu.vector_store %arg4[%c80, %c0_25], %20 {strides = array<i32>} : memref<216x1024xf32, #tpu.memory_space<vmem>>, vector<8x1024xf32>,
    %c0_26 = arith.constant 0 : index
    %c66 = arith.constant 66 : index
    %22 = vector.load %arg1[%c0_26, %c66] : memref<8x1280xf32, #tpu.memory_space<vmem>>, vector<8x1024xf32>
    %c88 = arith.constant 88 : index
    %c0_27 = arith.constant 0 : index
    %23 = vector.load %arg4[%c88, %c0_27] : memref<216x1024xf32, #tpu.memory_space<vmem>>, vector<8x1024xf32>
    tpu.vector_store %arg4[%c88, %c0_27], %22 {strides = array<i32>} : memref<216x1024xf32, #tpu.memory_space<vmem>>, vector<8x1024xf32>,
    %c0_28 = arith.constant 0 : index
    %c72_29 = arith.constant 72 : index
    %24 = vector.load %arg1[%c0_28, %c72_29] : memref<8x1280xf32, #tpu.memory_space<vmem>>, vector<8x1024xf32>
    %c96 = arith.constant 96 : index
    %c0_30 = arith.constant 0 : index
    %25 = vector.load %arg4[%c96, %c0_30] : memref<216x1024xf32, #tpu.memory_space<vmem>>, vector<8x1024xf32>
    tpu.vector_store %arg4[%c96, %c0_30], %24 {strides = array<i32>} : memref<216x1024xf32, #tpu.memory_space<vmem>>, vector<8x1024xf32>,
    %c0_31 = arith.constant 0 : index
    %c73 = arith.constant 73 : index
    %26 = vector.load %arg1[%c0_31, %c73] : memref<8x1280xf32, #tpu.memory_space<vmem>>, vector<8x1024xf32>
    %c104 = arith.constant 104 : index
    %c0_32 = arith.constant 0 : index
    %27 = vector.load %arg4[%c104, %c0_32] : memref<216x1024xf32, #tpu.memory_space<vmem>>, vector<8x1024xf32>
    tpu.vector_store %arg4[%c104, %c0_32], %26 {strides = array<i32>} : memref<216x1024xf32, #tpu.memory_space<vmem>>, vector<8x1024xf32>,
    %c0_33 = arith.constant 0 : index
    %c74 = arith.constant 74 : index
    %28 = vector.load %arg1[%c0_33, %c74] : memref<8x1280xf32, #tpu.memory_space<vmem>>, vector<8x1024xf32>
    %c112 = arith.constant 112 : index
    %c0_34 = arith.constant 0 : index
    %29 = vector.load %arg4[%c112, %c0_34] : memref<216x1024xf32, #tpu.memory_space<vmem>>, vector<8x1024xf32>
    tpu.vector_store %arg4[%c112, %c0_34], %28 {strides = array<i32>} : memref<216x1024xf32, #tpu.memory_space<vmem>>, vector<8x1024xf32>,
    %c0_35 = arith.constant 0 : index
    %c80_36 = arith.constant 80 : index
    %30 = vector.load %arg1[%c0_35, %c80_36] : memref<8x1280xf32, #tpu.memory_space<vmem>>, vector<8x1024xf32>
    %c120 = arith.constant 120 : index
    %c0_37 = arith.constant 0 : index
    %31 = vector.load %arg4[%c120, %c0_37] : memref<216x1024xf32, #tpu.memory_space<vmem>>, vector<8x1024xf32>
    tpu.vector_store %arg4[%c120, %c0_37], %30 {strides = array<i32>} : memref<216x1024xf32, #tpu.memory_space<vmem>>, vector<8x1024xf32>,
    %c0_38 = arith.constant 0 : index
    %c81 = arith.constant 81 : index
    %32 = vector.load %arg1[%c0_38, %c81] : memref<8x1280xf32, #tpu.memory_space<vmem>>, vector<8x1024xf32>
    %c128 = arith.constant 128 : index
    %c0_39 = arith.constant 0 : index
    %33 = vector.load %arg4[%c128, %c0_39] : memref<216x1024xf32, #tpu.memory_space<vmem>>, vector<8x1024xf32>
    tpu.vector_store %arg4[%c128, %c0_39], %32 {strides = array<i32>} : memref<216x1024xf32, #tpu.memory_space<vmem>>, vector<8x1024xf32>,
    %c0_40 = arith.constant 0 : index
    %c82 = arith.constant 82 : index
    %34 = vector.load %arg1[%c0_40, %c82] : memref<8x1280xf32, #tpu.memory_space<vmem>>, vector<8x1024xf32>
    %c136 = arith.constant 136 : index
    %c0_41 = arith.constant 0 : index
    %35 = vector.load %arg4[%c136, %c0_41] : memref<216x1024xf32, #tpu.memory_space<vmem>>, vector<8x1024xf32>
    tpu.vector_store %arg4[%c136, %c0_41], %34 {strides = array<i32>} : memref<216x1024xf32, #tpu.memory_space<vmem>>, vector<8x1024xf32>,
    %c0_42 = arith.constant 0 : index
    %c128_43 = arith.constant 128 : index
    %36 = vector.load %arg1[%c0_42, %c128_43] : memref<8x1280xf32, #tpu.memory_space<vmem>>, vector<8x1024xf32>
    %c144 = arith.constant 144 : index
    %c0_44 = arith.constant 0 : index
    %37 = vector.load %arg4[%c144, %c0_44] : memref<216x1024xf32, #tpu.memory_space<vmem>>, vector<8x1024xf32>
    tpu.vector_store %arg4[%c144, %c0_44], %36 {strides = array<i32>} : memref<216x1024xf32, #tpu.memory_space<vmem>>, vector<8x1024xf32>,
    %c0_45 = arith.constant 0 : index
    %c129 = arith.constant 129 : index
    %38 = vector.load %arg1[%c0_45, %c129] : memref<8x1280xf32, #tpu.memory_space<vmem>>, vector<8x1024xf32>
    %c152 = arith.constant 152 : index
    %c0_46 = arith.constant 0 : index
    %39 = vector.load %arg4[%c152, %c0_46] : memref<216x1024xf32, #tpu.memory_space<vmem>>, vector<8x1024xf32>
    tpu.vector_store %arg4[%c152, %c0_46], %38 {strides = array<i32>} : memref<216x1024xf32, #tpu.memory_space<vmem>>, vector<8x1024xf32>,
    %c0_47 = arith.constant 0 : index
    %c130 = arith.constant 130 : index
    %40 = vector.load %arg1[%c0_47, %c130] : memref<8x1280xf32, #tpu.memory_space<vmem>>, vector<8x1024xf32>
    %c160 = arith.constant 160 : index
    %c0_48 = arith.constant 0 : index
    %41 = vector.load %arg4[%c160, %c0_48] : memref<216x1024xf32, #tpu.memory_space<vmem>>, vector<8x1024xf32>
    tpu.vector_store %arg4[%c160, %c0_48], %40 {strides = array<i32>} : memref<216x1024xf32, #tpu.memory_space<vmem>>, vector<8x1024xf32>,
    %c0_49 = arith.constant 0 : index
    %c136_50 = arith.constant 136 : index
    %42 = vector.load %arg1[%c0_49, %c136_50] : memref<8x1280xf32, #tpu.memory_space<vmem>>, vector<8x1024xf32>
    %c168 = arith.constant 168 : index
    %c0_51 = arith.constant 0 : index
    %43 = vector.load %arg4[%c168, %c0_51] : memref<216x1024xf32, #tpu.memory_space<vmem>>, vector<8x1024xf32>
    tpu.vector_store %arg4[%c168, %c0_51], %42 {strides = array<i32>} : memref<216x1024xf32, #tpu.memory_space<vmem>>, vector<8x1024xf32>,
    %c0_52 = arith.constant 0 : index
    %c137 = arith.constant 137 : index
    %44 = vector.load %arg1[%c0_52, %c137] : memref<8x1280xf32, #tpu.memory_space<vmem>>, vector<8x1024xf32>
    %c176 = arith.constant 176 : index
    %c0_53 = arith.constant 0 : index
    %45 = vector.load %arg4[%c176, %c0_53] : memref<216x1024xf32, #tpu.memory_space<vmem>>, vector<8x1024xf32>
    tpu.vector_store %arg4[%c176, %c0_53], %44 {strides = array<i32>} : memref<216x1024xf32, #tpu.memory_space<vmem>>, vector<8x1024xf32>,
    %c0_54 = arith.constant 0 : index
    %c138 = arith.constant 138 : index
    %46 = vector.load %arg1[%c0_54, %c138] : memref<8x1280xf32, #tpu.memory_space<vmem>>, vector<8x1024xf32>
    %c184 = arith.constant 184 : index
    %c0_55 = arith.constant 0 : index
    %47 = vector.load %arg4[%c184, %c0_55] : memref<216x1024xf32, #tpu.memory_space<vmem>>, vector<8x1024xf32>
    tpu.vector_store %arg4[%c184, %c0_55], %46 {strides = array<i32>} : memref<216x1024xf32, #tpu.memory_space<vmem>>, vector<8x1024xf32>,
    %c0_56 = arith.constant 0 : index
    %c144_57 = arith.constant 144 : index
    %48 = vector.load %arg1[%c0_56, %c144_57] : memref<8x1280xf32, #tpu.memory_space<vmem>>, vector<8x1024xf32>
    %c192 = arith.constant 192 : index
    %c0_58 = arith.constant 0 : index
    %49 = vector.load %arg4[%c192, %c0_58] : memref<216x1024xf32, #tpu.memory_space<vmem>>, vector<8x1024xf32>
    tpu.vector_store %arg4[%c192, %c0_58], %48 {strides = array<i32>} : memref<216x1024xf32, #tpu.memory_space<vmem>>, vector<8x1024xf32>,
    %c0_59 = arith.constant 0 : index
    %c145 = arith.constant 145 : index
    %50 = vector.load %arg1[%c0_59, %c145] : memref<8x1280xf32, #tpu.memory_space<vmem>>, vector<8x1024xf32>
    %c200 = arith.constant 200 : index
    %c0_60 = arith.constant 0 : index
    %51 = vector.load %arg4[%c200, %c0_60] : memref<216x1024xf32, #tpu.memory_space<vmem>>, vector<8x1024xf32>
    tpu.vector_store %arg4[%c200, %c0_60], %50 {strides = array<i32>} : memref<216x1024xf32, #tpu.memory_space<vmem>>, vector<8x1024xf32>,
    %c0_61 = arith.constant 0 : index
    %c146 = arith.constant 146 : index
    %52 = vector.load %arg1[%c0_61, %c146] : memref<8x1280xf32, #tpu.memory_space<vmem>>, vector<8x1024xf32>
    %c208 = arith.constant 208 : index
    %c0_62 = arith.constant 0 : index
    %53 = vector.load %arg4[%c208, %c0_62] : memref<216x1024xf32, #tpu.memory_space<vmem>>, vector<8x1024xf32>
    tpu.vector_store %arg4[%c208, %c0_62], %52 {strides = array<i32>} : memref<216x1024xf32, #tpu.memory_space<vmem>>, vector<8x1024xf32>,
    %c0_63 = arith.constant 0 : index
    %c0_64 = arith.constant 0 : index
    %54 = vector.load %arg2[%c0_63, %c0_64] : memref<8x216xf32, #tpu.memory_space<vmem>>, vector<8x216xf32>
    %c0_65 = arith.constant 0 : index
    %c0_66 = arith.constant 0 : index
    %55 = vector.load %arg4[%c0_65, %c0_66] : memref<216x1024xf32, #tpu.memory_space<vmem>>, vector<216x1024xf32>
    %cst = arith.constant dense<0.000000e+00> : vector<8x1024xf32>
    %56 = tpu.matmul %54, %55, %cst {dimension_numbers = #tpu.dot_dimension_numbers<[1], [0], [0], [1], [0, 0, 1, 1], [], []>} : vector<8x216xf32>, vector<216x1024xf32>, vector<8x1024xf32> -> vector<8x1024xf32>
    %c0_67 = arith.constant 0 : index
    %c0_68 = arith.constant 0 : index
    %57 = vector.load %arg3[%c0_67, %c0_68] : memref<8x1024xf32, #tpu.memory_space<vmem>>, vector<8x1024xf32>
    tpu.vector_store %arg3[%c0_67, %c0_68], %56 {strides = array<i32>} : memref<8x1024xf32, #tpu.memory_space<vmem>>, vector<8x1024xf32>,
    return
  }
  func.func @transform_0(%arg0: i32) -> (i32, i32) {
    %c0_i32 = arith.constant 0 : i32
    %c0_i32_0 = arith.constant 0 : i32
    %c0_i32_1 = arith.constant 0 : i32
    return %c0_i32, %c0_i32_0 : i32, i32
  }
  func.func @transform_1(%arg0: i32) -> (i32, i32) {
    %c0_i32 = arith.constant 0 : i32
    %c0_i32_0 = arith.constant 0 : i32
    %c0_i32_1 = arith.constant 0 : i32
    return %c0_i32, %c0_i32_0 : i32, i32
  }
  func.func @transform_2(%arg0: i32) -> (i32, i32) {
    %c0_i32 = arith.constant 0 : i32
    %c0_i32_0 = arith.constant 0 : i32
    %c0_i32_1 = arith.constant 0 : i32
    return %c0_i32, %c0_i32_0 : i32, i32
  }
}

</mosaic_0001>

<llo_original>
// kernel: conv3d_pallas.1
$region0: #{conv3d_pallas.1}
  #allocation0 [shape = 'u32[]', space=smem, size = 0x4, offset = 0x4, fixed_abs, tag = 'smem constant byte address 0x4 - core index']
  #allocation1 [shape = 'u32[144,128]{1,0:T(1,128)}', space=vmem, size = 0x12000, scoped, tag = 'internal scratch']
  #allocation2 [shape = 'f32[216,1024]{1,0:T(8,128)}', space=vmem, size = 0xd8000, scoped, tag = 'scratch operand']
  %s0 = inlined_call_operand.vmem [shape: f32[8,1280], index: 0, kind: input, shape index: {}]
  %s1 = inlined_call_operand.vmem [shape: f32[8,216], index: 1, kind: input, shape index: {}]
  %s2 = inlined_call_operand.vmem [shape: f32[8,1024], index: 2, kind: output, shape index: {}]
  %s3 = sld [smem:[#allocation0]]
  $region18: #{conv3d_pallas.1} parent=0
    _
  %s5 = ssub.s32 1, %s3
  %s6 = scalar_select 0, %s5, %s3
  // Predicated region
  $region2: #{conv3d_pallas.1} parent=0 // pred_check
    _
  $region3: #{conv3d_pallas.1} parent=0 // pred_check_branch
    %8 = sbr.rel (0) target = $region5
  $region4: #{conv3d_pallas.1} parent=0 // pred_region
    _
  $region5: #{conv3d_pallas.1} parent=0 // pred_fallthru
    _
  // Predicated region
  $region6: #{conv3d_pallas.1} parent=0 // pred_check
    _
  $region7: #{conv3d_pallas.1} parent=0 // pred_check_branch
    %10 = sbr.rel (0) target = $region9
  $region8: #{conv3d_pallas.1} parent=0 // pred_region
    _
  $region9: #{conv3d_pallas.1} parent=0 // pred_fallthru
    _
  %v11 = vld [vmem:[%s0] sm:$0xff]
  %v12 = vld [vmem:[%s0 + $0x8] sm:$0xff]
  %v13 = vld [vmem:[%s0 + $0x10] sm:$0xff]
  %v14 = vld [vmem:[%s0 + $0x18] sm:$0xff]
  %v15 = vld [vmem:[%s0 + $0x20] sm:$0xff]
  %v16 = vld [vmem:[%s0 + $0x28] sm:$0xff]
  %v17 = vld [vmem:[%s0 + $0x30] sm:$0xff]
  %v18 = vld [vmem:[%s0 + $0x38] sm:$0xff]
  %19 = vst [vmem:[#allocation2] sm:$0xff] %v11
  %20 = vst [vmem:[#allocation2 + $0x8] sm:$0xff] %v12
  %21 = vst [vmem:[#allocation2 + $0x10] sm:$0xff] %v13
  %22 = vst [vmem:[#allocation2 + $0x18] sm:$0xff] %v14
  %23 = vst [vmem:[#allocation2 + $0x20] sm:$0xff] %v15
  %24 = vst [vmem:[#allocation2 + $0x28] sm:$0xff] %v16
  %25 = vst [vmem:[#allocation2 + $0x30] sm:$0xff] %v17
  %26 = vst [vmem:[#allocation2 + $0x38] sm:$0xff] %v18
  %v27 = vld [vmem:[%s0] sm:$0xff]
  %v28 = vld [vmem:[%s0 + $0x8] sm:$0xff]
  %v29 = vld [vmem:[%s0 + $0x10] sm:$0xff]
  %v30 = vld [vmem:[%s0 + $0x18] sm:$0xff]
  %v31 = vld [vmem:[%s0 + $0x20] sm:$0xff]
  %v32 = vld [vmem:[%s0 + $0x28] sm:$0xff]
  %v33 = vld [vmem:[%s0 + $0x30] sm:$0xff]
  %v34 = vld [vmem:[%s0 + $0x38] sm:$0xff]
  %v35 = vld [vmem:[%s0 + $0x40] sm:$0xff]
  %45 = vrot.lane.b32.xlu0 %v27, 127
  %v46 = vpop.permute.xlu0 %45
  %47 = vrot.lane.b32.xlu0 %v28, 127
  %v48 = vpop.permute.xlu0 %47
  %49 = vrot.lane.b32.xlu0 %v29, 127
  %v50 = vpop.permute.xlu0 %49
  %51 = vrot.lane.b32.xlu0 %v30, 127
  %v52 = vpop.permute.xlu0 %51
  %53 = vrot.lane.b32.xlu0 %v31, 127
  %v54 = vpop.permute.xlu0 %53
  %55 = vrot.lane.b32.xlu0 %v32, 127
  %v56 = vpop.permute.xlu0 %55
  %57 = vrot.lane.b32.xlu0 %v33, 127
  %v58 = vpop.permute.xlu0 %57
  %59 = vrot.lane.b32.xlu0 %v34, 127
  %v60 = vpop.permute.xlu0 %59
  %61 = vrot.lane.b32.xlu0 %v35, 127
  %v62 = vpop.permute.xlu0 %61
  %vm63 = vcmask 1039360
  %v64 = vsel %vm63, %v46, %v48
  %v65 = vsel %vm63, %v48, %v50
  %v66 = vsel %vm63, %v50, %v52
  %v67 = vsel %vm63, %v52, %v54
  %v68 = vsel %vm63, %v54, %v56
  %v69 = vsel %vm63, %v56, %v58
  %v70 = vsel %vm63, %v58, %v60
  %v71 = vsel %vm63, %v60, %v62
  %80 = vst [vmem:[#allocation2 + $0x40] sm:$0xff] %v64
  %81 = vst [vmem:[#allocation2 + $0x48] sm:$0xff] %v65
  %82 = vst [vmem:[#allocation2 + $0x50] sm:$0xff] %v66
  %83 = vst [vmem:[#allocation2 + $0x58] sm:$0xff] %v67
  %84 = vst [vmem:[#allocation2 + $0x60] sm:$0xff] %v68
  %85 = vst [vmem:[#allocation2 + $0x68] sm:$0xff] %v69
  %86 = vst [vmem:[#allocation2 + $0x70] sm:$0xff] %v70
  %87 = vst [vmem:[#allocation2 + $0x78] sm:$0xff] %v71
  %v88 = vld [vmem:[%s0] sm:$0xff]
  %v89 = vld [vmem:[%s0 + $0x8] sm:$0xff]
  %v90 = vld [vmem:[%s0 + $0x10] sm:$0xff]
  %v91 = vld [vmem:[%s0 + $0x18] sm:$0xff]
  %v92 = vld [vmem:[%s0 + $0x20] sm:$0xff]
  %v93 = vld [vmem:[%s0 + $0x28] sm:$0xff]
  %v94 = vld [vmem:[%s0 + $0x30] sm:$0xff]
  %v95 = vld [vmem:[%s0 + $0x38] sm:$0xff]
  %v96 = vld [vmem:[%s0 + $0x40] sm:$0xff]
  %106 = vrot.lane.b32.xlu0 %v88, 126
  %v107 = vpop.permute.xlu0 %106
  %108 = vrot.lane.b32.xlu0 %v89, 126
  %v109 = vpop.permute.xlu0 %108
  %110 = vrot.lane.b32.xlu0 %v90, 126
  %v111 = vpop.permute.xlu0 %110
  %112 = vrot.lane.b32.xlu0 %v91, 126
  %v113 = vpop.permute.xlu0 %112
  %114 = vrot.lane.b32.xlu0 %v92, 126
  %v115 = vpop.permute.xlu0 %114
  %116 = vrot.lane.b32.xlu0 %v93, 126
  %v117 = vpop.permute.xlu0 %116
  %118 = vrot.lane.b32.xlu0 %v94, 126
  %v119 = vpop.permute.xlu0 %118
  %120 = vrot.lane.b32.xlu0 %v95, 126
  %v121 = vpop.permute.xlu0 %120
  %122 = vrot.lane.b32.xlu0 %v96, 126
  %v123 = vpop.permute.xlu0 %122
  %vm124 = vcmask 1031168
  %v125 = vsel %vm124, %v107, %v109
  %v126 = vsel %vm124, %v109, %v111
  %v127 = vsel %vm124, %v111, %v113
  %v128 = vsel %vm124, %v113, %v115
  %v129 = vsel %vm124, %v115, %v117
  %v130 = vsel %vm124, %v117, %v119
  %v131 = vsel %vm124, %v119, %v121
  %v132 = vsel %vm124, %v121, %v123
  %141 = vst [vmem:[#allocation2 + $0x80] sm:$0xff] %v125
  %142 = vst [vmem:[#allocation2 + $0x88] sm:$0xff] %v126
  %143 = vst [vmem:[#allocation2 + $0x90] sm:$0xff] %v127
  %144 = vst [vmem:[#allocation2 + $0x98] sm:$0xff] %v128
  %145 = vst [vmem:[#allocation2 + $0xa0] sm:$0xff] %v129
  %146 = vst [vmem:[#allocation2 + $0xa8] sm:$0xff] %v130
  %147 = vst [vmem:[#allocation2 + $0xb0] sm:$0xff] %v131
  %148 = vst [vmem:[#allocation2 + $0xb8] sm:$0xff] %v132
  %v149 = vld [vmem:[%s0] sm:$0xff]
  %v150 = vld [vmem:[%s0 + $0x8] sm:$0xff]
  %v151 = vld [vmem:[%s0 + $0x10] sm:$0xff]
  %v152 = vld [vmem:[%s0 + $0x18] sm:$0xff]
  %v153 = vld [vmem:[%s0 + $0x20] sm:$0xff]
  %v154 = vld [vmem:[%s0 + $0x28] sm:$0xff]
  %v155 = vld [vmem:[%s0 + $0x30] sm:$0xff]
  %v156 = vld [vmem:[%s0 + $0x38] sm:$0xff]
  %v157 = vld [vmem:[%s0 + $0x40] sm:$0xff]
  %167 = vrot.lane.b32.xlu0 %v149, 120
  %v168 = vpop.permute.xlu0 %167
  %169 = vrot.lane.b32.xlu0 %v150, 120
  %v170 = vpop.permute.xlu0 %169
  %171 = vrot.lane.b32.xlu0 %v151, 120
  %v172 = vpop.permute.xlu0 %171
  %173 = vrot.lane.b32.xlu0 %v152, 120
  %v174 = vpop.permute.xlu0 %173
  %175 = vrot.lane.b32.xlu0 %v153, 120
  %v176 = vpop.permute.xlu0 %175
  %177 = vrot.lane.b32.xlu0 %v154, 120
  %v178 = vpop.permute.xlu0 %177
  %179 = vrot.lane.b32.xlu0 %v155, 120
  %v180 = vpop.permute.xlu0 %179
  %181 = vrot.lane.b32.xlu0 %v156, 120
  %v182 = vpop.permute.xlu0 %181
  %183 = vrot.lane.b32.xlu0 %v157, 120
  %v184 = vpop.permute.xlu0 %183
  %vm185 = vcmask 982016
  %v186 = vsel %vm185, %v168, %v170
  %v187 = vsel %vm185, %v170, %v172
  %v188 = vsel %vm185, %v172, %v174
  %v189 = vsel %vm185, %v174, %v176
  %v190 = vsel %vm185, %v176, %v178
  %v191 = vsel %vm185, %v178, %v180
  %v192 = vsel %vm185, %v180, %v182
  %v193 = vsel %vm185, %v182, %v184
  %202 = vst [vmem:[#allocation2 + $0xc0] sm:$0xff] %v186
  %203 = vst [vmem:[#allocation2 + $0xc8] sm:$0xff] %v187
  %204 = vst [vmem:[#allocation2 + $0xd0] sm:$0xff] %v188
  %205 = vst [vmem:[#allocation2 + $0xd8] sm:$0xff] %v189
  %206 = vst [vmem:[#allocation2 + $0xe0] sm:$0xff] %v190
  %207 = vst [vmem:[#allocation2 + $0xe8] sm:$0xff] %v191
  %208 = vst [vmem:[#allocation2 + $0xf0] sm:$0xff] %v192
  %209 = vst [vmem:[#allocation2 + $0xf8] sm:$0xff] %v193
  %v210 = vld [vmem:[%s0] sm:$0xff]
  %v211 = vld [vmem:[%s0 + $0x8] sm:$0xff]
  %v212 = vld [vmem:[%s0 + $0x10] sm:$0xff]
  %v213 = vld [vmem:[%s0 + $0x18] sm:$0xff]
  %v214 = vld [vmem:[%s0 + $0x20] sm:$0xff]
  %v215 = vld [vmem:[%s0 + $0x28] sm:$0xff]
  %v216 = vld [vmem:[%s0 + $0x30] sm:$0xff]
  %v217 = vld [vmem:[%s0 + $0x38] sm:$0xff]
  %v218 = vld [vmem:[%s0 + $0x40] sm:$0xff]
  %228 = vrot.lane.b32.xlu0 %v210, 119
  %v229 = vpop.permute.xlu0 %228
  %230 = vrot.lane.b32.xlu0 %v211, 119
  %v231 = vpop.permute.xlu0 %230
  %232 = vrot.lane.b32.xlu0 %v212, 119
  %v233 = vpop.permute.xlu0 %232
  %234 = vrot.lane.b32.xlu0 %v213, 119
  %v235 = vpop.permute.xlu0 %234
  %236 = vrot.lane.b32.xlu0 %v214, 119
  %v237 = vpop.permute.xlu0 %236
  %238 = vrot.lane.b32.xlu0 %v215, 119
  %v239 = vpop.permute.xlu0 %238
  %240 = vrot.lane.b32.xlu0 %v216, 119
  %v241 = vpop.permute.xlu0 %240
  %242 = vrot.lane.b32.xlu0 %v217, 119
  %v243 = vpop.permute.xlu0 %242
  %244 = vrot.lane.b32.xlu0 %v218, 119
  %v245 = vpop.permute.xlu0 %244
  %vm246 = vcmask 973824
  %v247 = vsel %vm246, %v229, %v231
  %v248 = vsel %vm246, %v231, %v233
  %v249 = vsel %vm246, %v233, %v235
  %v250 = vsel %vm246, %v235, %v237
  %v251 = vsel %vm246, %v237, %v239
  %v252 = vsel %vm246, %v239, %v241
  %v253 = vsel %vm246, %v241, %v243
  %v254 = vsel %vm246, %v243, %v245
  %263 = vst [vmem:[#allocation2 + $0x100] sm:$0xff] %v247
  %264 = vst [vmem:[#allocation2 + $0x108] sm:$0xff] %v248
  %265 = vst [vmem:[#allocation2 + $0x110] sm:$0xff] %v249
  %266 = vst [vmem:[#allocation2 + $0x118] sm:$0xff] %v250
  %267 = vst [vmem:[#allocation2 + $0x120] sm:$0xff] %v251
  %268 = vst [vmem:[#allocation2 + $0x128] sm:$0xff] %v252
  %269 = vst [vmem:[#allocation2 + $0x130] sm:$0xff] %v253
  %270 = vst [vmem:[#allocation2 + $0x138] sm:$0xff] %v254
  %v271 = vld [vmem:[%s0] sm:$0xff]
  %v272 = vld [vmem:[%s0 + $0x8] sm:$0xff]
  %v273 = vld [vmem:[%s0 + $0x10] sm:$0xff]
  %v274 = vld [vmem:[%s0 + $0x18] sm:$0xff]
  %v275 = vld [vmem:[%s0 + $0x20] sm:$0xff]
  %v276 = vld [vmem:[%s0 + $0x28] sm:$0xff]
  %v277 = vld [vmem:[%s0 + $0x30] sm:$0xff]
  %v278 = vld [vmem:[%s0 + $0x38] sm:$0xff]
  %v279 = vld [vmem:[%s0 + $0x40] sm:$0xff]
  %289 = vrot.lane.b32.xlu0 %v271, 118
  %v290 = vpop.permute.xlu0 %289
  %291 = vrot.lane.b32.xlu0 %v272, 118
  %v292 = vpop.permute.xlu0 %291
  %293 = vrot.lane.b32.xlu0 %v273, 118
  %v294 = vpop.permute.xlu0 %293
  %295 = vrot.lane.b32.xlu0 %v274, 118
  %v296 = vpop.permute.xlu0 %295
  %297 = vrot.lane.b32.xlu0 %v275, 118
  %v298 = vpop.permute.xlu0 %297
  %299 = vrot.lane.b32.xlu0 %v276, 118
  %v300 = vpop.permute.xlu0 %299
  %301 = vrot.lane.b32.xlu0 %v277, 118
  %v302 = vpop.permute.xlu0 %301
  %303 = vrot.lane.b32.xlu0 %v278, 118
  %v304 = vpop.permute.xlu0 %303
  %305 = vrot.lane.b32.xlu0 %v279, 118
  %v306 = vpop.permute.xlu0 %305
  %vm307 = vcmask 965632
  %v308 = vsel %vm307, %v290, %v292
  %v309 = vsel %vm307, %v292, %v294
  %v310 = vsel %vm307, %v294, %v296
  %v311 = vsel %vm307, %v296, %v298
  %v312 = vsel %vm307, %v298, %v300
  %v313 = vsel %vm307, %v300, %v302
  %v314 = vsel %vm307, %v302, %v304
  %v315 = vsel %vm307, %v304, %v306
  %324 = vst [vmem:[#allocation2 + $0x140] sm:$0xff] %v308
  %325 = vst [vmem:[#allocation2 + $0x148] sm:$0xff] %v309
  %326 = vst [vmem:[#allocation2 + $0x150] sm:$0xff] %v310
  %327 = vst [vmem:[#allocation2 + $0x158] sm:$0xff] %v311
  %328 = vst [vmem:[#allocation2 + $0x160] sm:$0xff] %v312
  %329 = vst [vmem:[#allocation2 + $0x168] sm:$0xff] %v313
  %330 = vst [vmem:[#allocation2 + $0x170] sm:$0xff] %v314
  %331 = vst [vmem:[#allocation2 + $0x178] sm:$0xff] %v315
  %v332 = vld [vmem:[%s0] sm:$0xff]
  %v333 = vld [vmem:[%s0 + $0x8] sm:$0xff]
  %v334 = vld [vmem:[%s0 + $0x10] sm:$0xff]
  %v335 = vld [vmem:[%s0 + $0x18] sm:$0xff]
  %v336 = vld [vmem:[%s0 + $0x20] sm:$0xff]
  %v337 = vld [vmem:[%s0 + $0x28] sm:$0xff]
  %v338 = vld [vmem:[%s0 + $0x30] sm:$0xff]
  %v339 = vld [vmem:[%s0 + $0x38] sm:$0xff]
  %v340 = vld [vmem:[%s0 + $0x40] sm:$0xff]
  %350 = vrot.lane.b32.xlu0 %v332, 112
  %v351 = vpop.permute.xlu0 %350
  %352 = vrot.lane.b32.xlu0 %v333, 112
  %v353 = vpop.permute.xlu0 %352
  %354 = vrot.lane.b32.xlu0 %v334, 112
  %v355 = vpop.permute.xlu0 %354
  %356 = vrot.lane.b32.xlu0 %v335, 112
  %v357 = vpop.permute.xlu0 %356
  %358 = vrot.lane.b32.xlu0 %v336, 112
  %v359 = vpop.permute.xlu0 %358
  %360 = vrot.lane.b32.xlu0 %v337, 112
  %v361 = vpop.permute.xlu0 %360
  %362 = vrot.lane.b32.xlu0 %v338, 112
  %v363 = vpop.permute.xlu0 %362
  %364 = vrot.lane.b32.xlu0 %v339, 112
  %v365 = vpop.permute.xlu0 %364
  %366 = vrot.lane.b32.xlu0 %v340, 112
  %v367 = vpop.permute.xlu0 %366
  %vm368 = vcmask 916480
  %v369 = vsel %vm368, %v351, %v353
  %v370 = vsel %vm368, %v353, %v355
  %v371 = vsel %vm368, %v355, %v357
  %v372 = vsel %vm368, %v357, %v359
  %v373 = vsel %vm368, %v359, %v361
  %v374 = vsel %vm368, %v361, %v363
  %v375 = vsel %vm368, %v363, %v365
  %v376 = vsel %vm368, %v365, %v367
  %385 = vst [vmem:[#allocation2 + $0x180] sm:$0xff] %v369
  %386 = vst [vmem:[#allocation2 + $0x188] sm:$0xff] %v370
  %387 = vst [vmem:[#allocation2 + $0x190] sm:$0xff] %v371
  %388 = vst [vmem:[#allocation2 + $0x198] sm:$0xff] %v372
  %389 = vst [vmem:[#allocation2 + $0x1a0] sm:$0xff] %v373
  %390 = vst [vmem:[#allocation2 + $0x1a8] sm:$0xff] %v374
  %391 = vst [vmem:[#allocation2 + $0x1b0] sm:$0xff] %v375
  %392 = vst [vmem:[#allocation2 + $0x1b8] sm:$0xff] %v376
  %v393 = vld [vmem:[%s0] sm:$0xff]
  %v394 = vld [vmem:[%s0 + $0x8] sm:$0xff]
  %v395 = vld [vmem:[%s0 + $0x10] sm:$0xff]
  %v396 = vld [vmem:[%s0 + $0x18] sm:$0xff]
  %v397 = vld [vmem:[%s0 + $0x20] sm:$0xff]
  %v398 = vld [vmem:[%s0 + $0x28] sm:$0xff]
  %v399 = vld [vmem:[%s0 + $0x30] sm:$0xff]
  %v400 = vld [vmem:[%s0 + $0x38] sm:$0xff]
  %v401 = vld [vmem:[%s0 + $0x40] sm:$0xff]
  %411 = vrot.lane.b32.xlu0 %v393, 111
  %v412 = vpop.permute.xlu0 %411
  %413 = vrot.lane.b32.xlu0 %v394, 111
  %v414 = vpop.permute.xlu0 %413
  %415 = vrot.lane.b32.xlu0 %v395, 111
  %v416 = vpop.permute.xlu0 %415
  %417 = vrot.lane.b32.xlu0 %v396, 111
  %v418 = vpop.permute.xlu0 %417
  %419 = vrot.lane.b32.xlu0 %v397, 111
  %v420 = vpop.permute.xlu0 %419
  %421 = vrot.lane.b32.xlu0 %v398, 111
  %v422 = vpop.permute.xlu0 %421
  %423 = vrot.lane.b32.xlu0 %v399, 111
  %v424 = vpop.permute.xlu0 %423
  %425 = vrot.lane.b32.xlu0 %v400, 111
  %v426 = vpop.permute.xlu0 %425
  %427 = vrot.lane.b32.xlu0 %v401, 111
  %v428 = vpop.permute.xlu0 %427
  %vm429 = vcmask 908288
  %v430 = vsel %vm429, %v412, %v414
  %v431 = vsel %vm429, %v414, %v416
  %v432 = vsel %vm429, %v416, %v418
  %v433 = vsel %vm429, %v418, %v420
  %v434 = vsel %vm429, %v420, %v422
  %v435 = vsel %vm429, %v422, %v424
  %v436 = vsel %vm429, %v424, %v426
  %v437 = vsel %vm429, %v426, %v428
  %446 = vst [vmem:[#allocation2 + $0x1c0] sm:$0xff] %v430
  %447 = vst [vmem:[#allocation2 + $0x1c8] sm:$0xff] %v431
  %448 = vst [vmem:[#allocation2 + $0x1d0] sm:$0xff] %v432
  %449 = vst [vmem:[#allocation2 + $0x1d8] sm:$0xff] %v433
  %450 = vst [vmem:[#allocation2 + $0x1e0] sm:$0xff] %v434
  %451 = vst [vmem:[#allocation2 + $0x1e8] sm:$0xff] %v435
  %452 = vst [vmem:[#allocation2 + $0x1f0] sm:$0xff] %v436
  %453 = vst [vmem:[#allocation2 + $0x1f8] sm:$0xff] %v437
  %v454 = vld [vmem:[%s0] sm:$0xff]
  %v455 = vld [vmem:[%s0 + $0x8] sm:$0xff]
  %v456 = vld [vmem:[%s0 + $0x10] sm:$0xff]
  %v457 = vld [vmem:[%s0 + $0x18] sm:$0xff]
  %v458 = vld [vmem:[%s0 + $0x20] sm:$0xff]
  %v459 = vld [vmem:[%s0 + $0x28] sm:$0xff]
  %v460 = vld [vmem:[%s0 + $0x30] sm:$0xff]
  %v461 = vld [vmem:[%s0 + $0x38] sm:$0xff]
  %v462 = vld [vmem:[%s0 + $0x40] sm:$0xff]
  %472 = vrot.lane.b32.xlu0 %v454, 110
  %v473 = vpop.permute.xlu0 %472
  %474 = vrot.lane.b32.xlu0 %v455, 110
  %v475 = vpop.permute.xlu0 %474
  %476 = vrot.lane.b32.xlu0 %v456, 110
  %v477 = vpop.permute.xlu0 %476
  %478 = vrot.lane.b32.xlu0 %v457, 110
  %v479 = vpop.permute.xlu0 %478
  %480 = vrot.lane.b32.xlu0 %v458, 110
  %v481 = vpop.permute.xlu0 %480
  %482 = vrot.lane.b32.xlu0 %v459, 110
  %v483 = vpop.permute.xlu0 %482
  %484 = vrot.lane.b32.xlu0 %v460, 110
  %v485 = vpop.permute.xlu0 %484
  %486 = vrot.lane.b32.xlu0 %v461, 110
  %v487 = vpop.permute.xlu0 %486
  %488 = vrot.lane.b32.xlu0 %v462, 110
  %v489 = vpop.permute.xlu0 %488
  %vm490 = vcmask 900096
  %v491 = vsel %vm490, %v473, %v475
  %v492 = vsel %vm490, %v475, %v477
  %v493 = vsel %vm490, %v477, %v479
  %v494 = vsel %vm490, %v479, %v481
  %v495 = vsel %vm490, %v481, %v483
  %v496 = vsel %vm490, %v483, %v485
  %v497 = vsel %vm490, %v485, %v487
  %v498 = vsel %vm490, %v487, %v489
  %507 = vst [vmem:[#allocation2 + $0x200] sm:$0xff] %v491
  %508 = vst [vmem:[#allocation2 + $0x208] sm:$0xff] %v492
  %509 = vst [vmem:[#allocation2 + $0x210] sm:$0xff] %v493
  %510 = vst [vmem:[#allocation2 + $0x218] sm:$0xff] %v494
  %511 = vst [vmem:[#allocation2 + $0x220] sm:$0xff] %v495
  %512 = vst [vmem:[#allocation2 + $0x228] sm:$0xff] %v496
  %513 = vst [vmem:[#allocation2 + $0x230] sm:$0xff] %v497
  %514 = vst [vmem:[#allocation2 + $0x238] sm:$0xff] %v498
  %v515 = vld [vmem:[%s0] sm:$0xff]
  %v516 = vld [vmem:[%s0 + $0x8] sm:$0xff]
  %v517 = vld [vmem:[%s0 + $0x10] sm:$0xff]
  %v518 = vld [vmem:[%s0 + $0x18] sm:$0xff]
  %v519 = vld [vmem:[%s0 + $0x20] sm:$0xff]
  %v520 = vld [vmem:[%s0 + $0x28] sm:$0xff]
  %v521 = vld [vmem:[%s0 + $0x30] sm:$0xff]
  %v522 = vld [vmem:[%s0 + $0x38] sm:$0xff]
  %v523 = vld [vmem:[%s0 + $0x40] sm:$0xff]
  %533 = vrot.lane.b32.xlu0 %v515, 64
  %v534 = vpop.permute.xlu0 %533
  %535 = vrot.lane.b32.xlu0 %v516, 64
  %v536 = vpop.permute.xlu0 %535
  %537 = vrot.lane.b32.xlu0 %v517, 64
  %v538 = vpop.permute.xlu0 %537
  %539 = vrot.lane.b32.xlu0 %v518, 64
  %v540 = vpop.permute.xlu0 %539
  %541 = vrot.lane.b32.xlu0 %v519, 64
  %v542 = vpop.permute.xlu0 %541
  %543 = vrot.lane.b32.xlu0 %v520, 64
  %v544 = vpop.permute.xlu0 %543
  %545 = vrot.lane.b32.xlu0 %v521, 64
  %v546 = vpop.permute.xlu0 %545
  %547 = vrot.lane.b32.xlu0 %v522, 64
  %v548 = vpop.permute.xlu0 %547
  %549 = vrot.lane.b32.xlu0 %v523, 64
  %v550 = vpop.permute.xlu0 %549
  %vm551 = vcmask 523264
  %v552 = vsel %vm551, %v534, %v536
  %v553 = vsel %vm551, %v536, %v538
  %v554 = vsel %vm551, %v538, %v540
  %v555 = vsel %vm551, %v540, %v542
  %v556 = vsel %vm551, %v542, %v544
  %v557 = vsel %vm551, %v544, %v546
  %v558 = vsel %vm551, %v546, %v548
  %v559 = vsel %vm551, %v548, %v550
  %568 = vst [vmem:[#allocation2 + $0x240] sm:$0xff] %v552
  %569 = vst [vmem:[#allocation2 + $0x248] sm:$0xff] %v553
  %570 = vst [vmem:[#allocation2 + $0x250] sm:$0xff] %v554
  %571 = vst [vmem:[#allocation2 + $0x258] sm:$0xff] %v555
  %572 = vst [vmem:[#allocation2 + $0x260] sm:$0xff] %v556
  %573 = vst [vmem:[#allocation2 + $0x268] sm:$0xff] %v557
  %574 = vst [vmem:[#allocation2 + $0x270] sm:$0xff] %v558
  %575 = vst [vmem:[#allocation2 + $0x278] sm:$0xff] %v559
  %v576 = vld [vmem:[%s0] sm:$0xff]
  %v577 = vld [vmem:[%s0 + $0x8] sm:$0xff]
  %v578 = vld [vmem:[%s0 + $0x10] sm:$0xff]
  %v579 = vld [vmem:[%s0 + $0x18] sm:$0xff]
  %v580 = vld [vmem:[%s0 + $0x20] sm:$0xff]
  %v581 = vld [vmem:[%s0 + $0x28] sm:$0xff]
  %v582 = vld [vmem:[%s0 + $0x30] sm:$0xff]
  %v583 = vld [vmem:[%s0 + $0x38] sm:$0xff]
  %v584 = vld [vmem:[%s0 + $0x40] sm:$0xff]
  %594 = vrot.lane.b32.xlu0 %v576, 63
  %v595 = vpop.permute.xlu0 %594
  %596 = vrot.lane.b32.xlu0 %v577, 63
  %v597 = vpop.permute.xlu0 %596
  %598 = vrot.lane.b32.xlu0 %v578, 63
  %v599 = vpop.permute.xlu0 %598
  %600 = vrot.lane.b32.xlu0 %v579, 63
  %v601 = vpop.permute.xlu0 %600
  %602 = vrot.lane.b32.xlu0 %v580, 63
  %v603 = vpop.permute.xlu0 %602
  %604 = vrot.lane.b32.xlu0 %v581, 63
  %v605 = vpop.permute.xlu0 %604
  %606 = vrot.lane.b32.xlu0 %v582, 63
  %v607 = vpop.permute.xlu0 %606
  %608 = vrot.lane.b32.xlu0 %v583, 63
  %v609 = vpop.permute.xlu0 %608
  %610 = vrot.lane.b32.xlu0 %v584, 63
  %v611 = vpop.permute.xlu0 %610
  %vm612 = vcmask 515072
  %v613 = vsel %vm612, %v595, %v597
  %v614 = vsel %vm612, %v597, %v599
  %v615 = vsel %vm612, %v599, %v601
  %v616 = vsel %vm612, %v601, %v603
  %v617 = vsel %vm612, %v603, %v605
  %v618 = vsel %vm612, %v605, %v607
  %v619 = vsel %vm612, %v607, %v609
  %v620 = vsel %vm612, %v609, %v611
  %629 = vst [vmem:[#allocation2 + $0x280] sm:$0xff] %v613
  %630 = vst [vmem:[#allocation2 + $0x288] sm:$0xff] %v614
  %631 = vst [vmem:[#allocation2 + $0x290] sm:$0xff] %v615
  %632 = vst [vmem:[#allocation2 + $0x298] sm:$0xff] %v616
  %633 = vst [vmem:[#allocation2 + $0x2a0] sm:$0xff] %v617
  %634 = vst [vmem:[#allocation2 + $0x2a8] sm:$0xff] %v618
  %635 = vst [vmem:[#allocation2 + $0x2b0] sm:$0xff] %v619
  %636 = vst [vmem:[#allocation2 + $0x2b8] sm:$0xff] %v620
  %v637 = vld [vmem:[%s0] sm:$0xff]
  %v638 = vld [vmem:[%s0 + $0x8] sm:$0xff]
  %v639 = vld [vmem:[%s0 + $0x10] sm:$0xff]
  %v640 = vld [vmem:[%s0 + $0x18] sm:$0xff]
  %v641 = vld [vmem:[%s0 + $0x20] sm:$0xff]
  %v642 = vld [vmem:[%s0 + $0x28] sm:$0xff]
  %v643 = vld [vmem:[%s0 + $0x30] sm:$0xff]
  %v644 = vld [vmem:[%s0 + $0x38] sm:$0xff]
  %v645 = vld [vmem:[%s0 + $0x40] sm:$0xff]
  %655 = vrot.lane.b32.xlu0 %v637, 62
  %v656 = vpop.permute.xlu0 %655
  %657 = vrot.lane.b32.xlu0 %v638, 62
  %v658 = vpop.permute.xlu0 %657
  %659 = vrot.lane.b32.xlu0 %v639, 62
  %v660 = vpop.permute.xlu0 %659
  %661 = vrot.lane.b32.xlu0 %v640, 62
  %v662 = vpop.permute.xlu0 %661
  %663 = vrot.lane.b32.xlu0 %v641, 62
  %v664 = vpop.permute.xlu0 %663
  %665 = vrot.lane.b32.xlu0 %v642, 62
  %v666 = vpop.permute.xlu0 %665
  %667 = vrot.lane.b32.xlu0 %v643, 62
  %v668 = vpop.permute.xlu0 %667
  %669 = vrot.lane.b32.xlu0 %v644, 62
  %v670 = vpop.permute.xlu0 %669
  %671 = vrot.lane.b32.xlu0 %v645, 62
  %v672 = vpop.permute.xlu0 %671
  %vm673 = vcmask 506880
  %v674 = vsel %vm673, %v656, %v658
  %v675 = vsel %vm673, %v658, %v660
  %v676 = vsel %vm673, %v660, %v662
  %v677 = vsel %vm673, %v662, %v664
  %v678 = vsel %vm673, %v664, %v666
  %v679 = vsel %vm673, %v666, %v668
  %v680 = vsel %vm673, %v668, %v670
  %v681 = vsel %vm673, %v670, %v672
  %690 = vst [vmem:[#allocation2 + $0x2c0] sm:$0xff] %v674
  %691 = vst [vmem:[#allocation2 + $0x2c8] sm:$0xff] %v675
  %692 = vst [vmem:[#allocation2 + $0x2d0] sm:$0xff] %v676
  %693 = vst [vmem:[#allocation2 + $0x2d8] sm:$0xff] %v677
  %694 = vst [vmem:[#allocation2 + $0x2e0] sm:$0xff] %v678
  %695 = vst [vmem:[#allocation2 + $0x2e8] sm:$0xff] %v679
  %696 = vst [vmem:[#allocation2 + $0x2f0] sm:$0xff] %v680
  %697 = vst [vmem:[#allocation2 + $0x2f8] sm:$0xff] %v681
  %v698 = vld [vmem:[%s0] sm:$0xff]
  %v699 = vld [vmem:[%s0 + $0x8] sm:$0xff]
  %v700 = vld [vmem:[%s0 + $0x10] sm:$0xff]
  %v701 = vld [vmem:[%s0 + $0x18] sm:$0xff]
  %v702 = vld [vmem:[%s0 + $0x20] sm:$0xff]
  %v703 = vld [vmem:[%s0 + $0x28] sm:$0xff]
  %v704 = vld [vmem:[%s0 + $0x30] sm:$0xff]
  %v705 = vld [vmem:[%s0 + $0x38] sm:$0xff]
  %v706 = vld [vmem:[%s0 + $0x40] sm:$0xff]
  %716 = vrot.lane.b32.xlu0 %v698, 56
  %v717 = vpop.permute.xlu0 %716
  %718 = vrot.lane.b32.xlu0 %v699, 56
  %v719 = vpop.permute.xlu0 %718
  %720 = vrot.lane.b32.xlu0 %v700, 56
  %v721 = vpop.permute.xlu0 %720
  %722 = vrot.lane.b32.xlu0 %v701, 56
  %v723 = vpop.permute.xlu0 %722
  %724 = vrot.lane.b32.xlu0 %v702, 56
  %v725 = vpop.permute.xlu0 %724
  %726 = vrot.lane.b32.xlu0 %v703, 56
  %v727 = vpop.permute.xlu0 %726
  %728 = vrot.lane.b32.xlu0 %v704, 56
  %v729 = vpop.permute.xlu0 %728
  %730 = vrot.lane.b32.xlu0 %v705, 56
  %v731 = vpop.permute.xlu0 %730
  %732 = vrot.lane.b32.xlu0 %v706, 56
  %v733 = vpop.permute.xlu0 %732
  %vm734 = vcmask 457728
  %v735 = vsel %vm734, %v717, %v719
  %v736 = vsel %vm734, %v719, %v721
  %v737 = vsel %vm734, %v721, %v723
  %v738 = vsel %vm734, %v723, %v725
  %v739 = vsel %vm734, %v725, %v727
  %v740 = vsel %vm734, %v727, %v729
  %v741 = vsel %vm734, %v729, %v731
  %v742 = vsel %vm734, %v731, %v733
  %751 = vst [vmem:[#allocation2 + $0x300] sm:$0xff] %v735
  %752 = vst [vmem:[#allocation2 + $0x308] sm:$0xff] %v736
  %753 = vst [vmem:[#allocation2 + $0x310] sm:$0xff] %v737
  %754 = vst [vmem:[#allocation2 + $0x318] sm:$0xff] %v738
  %755 = vst [vmem:[#allocation2 + $0x320] sm:$0xff] %v739
  %756 = vst [vmem:[#allocation2 + $0x328] sm:$0xff] %v740
  %757 = vst [vmem:[#allocation2 + $0x330] sm:$0xff] %v741
  %758 = vst [vmem:[#allocation2 + $0x338] sm:$0xff] %v742
  %v759 = vld [vmem:[%s0] sm:$0xff]
  %v760 = vld [vmem:[%s0 + $0x8] sm:$0xff]
  %v761 = vld [vmem:[%s0 + $0x10] sm:$0xff]
  %v762 = vld [vmem:[%s0 + $0x18] sm:$0xff]
  %v763 = vld [vmem:[%s0 + $0x20] sm:$0xff]
  %v764 = vld [vmem:[%s0 + $0x28] sm:$0xff]
  %v765 = vld [vmem:[%s0 + $0x30] sm:$0xff]
  %v766 = vld [vmem:[%s0 + $0x38] sm:$0xff]
  %v767 = vld [vmem:[%s0 + $0x40] sm:$0xff]
  %777 = vrot.lane.b32.xlu0 %v759, 55
  %v778 = vpop.permute.xlu0 %777
  %779 = vrot.lane.b32.xlu0 %v760, 55
  %v780 = vpop.permute.xlu0 %779
  %781 = vrot.lane.b32.xlu0 %v761, 55
  %v782 = vpop.permute.xlu0 %781
  %783 = vrot.lane.b32.xlu0 %v762, 55
  %v784 = vpop.permute.xlu0 %783
  %785 = vrot.lane.b32.xlu0 %v763, 55
  %v786 = vpop.permute.xlu0 %785
  %787 = vrot.lane.b32.xlu0 %v764, 55
  %v788 = vpop.permute.xlu0 %787
  %789 = vrot.lane.b32.xlu0 %v765, 55
  %v790 = vpop.permute.xlu0 %789
  %791 = vrot.lane.b32.xlu0 %v766, 55
  %v792 = vpop.permute.xlu0 %791
  %793 = vrot.lane.b32.xlu0 %v767, 55
  %v794 = vpop.permute.xlu0 %793
  %vm795 = vcmask 449536
  %v796 = vsel %vm795, %v778, %v780
  %v797 = vsel %vm795, %v780, %v782
  %v798 = vsel %vm795, %v782, %v784
  %v799 = vsel %vm795, %v784, %v786
  %v800 = vsel %vm795, %v786, %v788
  %v801 = vsel %vm795, %v788, %v790
  %v802 = vsel %vm795, %v790, %v792
  %v803 = vsel %vm795, %v792, %v794
  %812 = vst [vmem:[#allocation2 + $0x340] sm:$0xff] %v796
  %813 = vst [vmem:[#allocation2 + $0x348] sm:$0xff] %v797
  %814 = vst [vmem:[#allocation2 + $0x350] sm:$0xff] %v798
  %815 = vst [vmem:[#allocation2 + $0x358] sm:$0xff] %v799
  %816 = vst [vmem:[#allocation2 + $0x360] sm:$0xff] %v800
  %817 = vst [vmem:[#allocation2 + $0x368] sm:$0xff] %v801
  %818 = vst [vmem:[#allocation2 + $0x370] sm:$0xff] %v802
  %819 = vst [vmem:[#allocation2 + $0x378] sm:$0xff] %v803
  %v820 = vld [vmem:[%s0] sm:$0xff]
  %v821 = vld [vmem:[%s0 + $0x8] sm:$0xff]
  %v822 = vld [vmem:[%s0 + $0x10] sm:$0xff]
  %v823 = vld [vmem:[%s0 + $0x18] sm:$0xff]
  %v824 = vld [vmem:[%s0 + $0x20] sm:$0xff]
  %v825 = vld [vmem:[%s0 + $0x28] sm:$0xff]
  %v826 = vld [vmem:[%s0 + $0x30] sm:$0xff]
  %v827 = vld [vmem:[%s0 + $0x38] sm:$0xff]
  %v828 = vld [vmem:[%s0 + $0x40] sm:$0xff]
  %838 = vrot.lane.b32.xlu0 %v820, 54
  %v839 = vpop.permute.xlu0 %838
  %840 = vrot.lane.b32.xlu0 %v821, 54
  %v841 = vpop.permute.xlu0 %840
  %842 = vrot.lane.b32.xlu0 %v822, 54
  %v843 = vpop.permute.xlu0 %842
  %844 = vrot.lane.b32.xlu0 %v823, 54
  %v845 = vpop.permute.xlu0 %844
  %846 = vrot.lane.b32.xlu0 %v824, 54
  %v847 = vpop.permute.xlu0 %846
  %848 = vrot.lane.b32.xlu0 %v825, 54
  %v849 = vpop.permute.xlu0 %848
  %850 = vrot.lane.b32.xlu0 %v826, 54
  %v851 = vpop.permute.xlu0 %850
  %852 = vrot.lane.b32.xlu0 %v827, 54
  %v853 = vpop.permute.xlu0 %852
  %854 = vrot.lane.b32.xlu0 %v828, 54
  %v855 = vpop.permute.xlu0 %854
  %vm856 = vcmask 441344
  %v857 = vsel %vm856, %v839, %v841
  %v858 = vsel %vm856, %v841, %v843
  %v859 = vsel %vm856, %v843, %v845
  %v860 = vsel %vm856, %v845, %v847
  %v861 = vsel %vm856, %v847, %v849
  %v862 = vsel %vm856, %v849, %v851
  %v863 = vsel %vm856, %v851, %v853
  %v864 = vsel %vm856, %v853, %v855
  %873 = vst [vmem:[#allocation2 + $0x380] sm:$0xff] %v857
  %874 = vst [vmem:[#allocation2 + $0x388] sm:$0xff] %v858
  %875 = vst [vmem:[#allocation2 + $0x390] sm:$0xff] %v859
  %876 = vst [vmem:[#allocation2 + $0x398] sm:$0xff] %v860
  %877 = vst [vmem:[#allocation2 + $0x3a0] sm:$0xff] %v861
  %878 = vst [vmem:[#allocation2 + $0x3a8] sm:$0xff] %v862
  %879 = vst [vmem:[#allocation2 + $0x3b0] sm:$0xff] %v863
  %880 = vst [vmem:[#allocation2 + $0x3b8] sm:$0xff] %v864
  %v881 = vld [vmem:[%s0] sm:$0xff]
  %v882 = vld [vmem:[%s0 + $0x8] sm:$0xff]
  %v883 = vld [vmem:[%s0 + $0x10] sm:$0xff]
  %v884 = vld [vmem:[%s0 + $0x18] sm:$0xff]
  %v885 = vld [vmem:[%s0 + $0x20] sm:$0xff]
  %v886 = vld [vmem:[%s0 + $0x28] sm:$0xff]
  %v887 = vld [vmem:[%s0 + $0x30] sm:$0xff]
  %v888 = vld [vmem:[%s0 + $0x38] sm:$0xff]
  %v889 = vld [vmem:[%s0 + $0x40] sm:$0xff]
  %899 = vrot.lane.b32.xlu0 %v881, 48
  %v900 = vpop.permute.xlu0 %899
  %901 = vrot.lane.b32.xlu0 %v882, 48
  %v902 = vpop.permute.xlu0 %901
  %903 = vrot.lane.b32.xlu0 %v883, 48
  %v904 = vpop.permute.xlu0 %903
  %905 = vrot.lane.b32.xlu0 %v884, 48
  %v906 = vpop.permute.xlu0 %905
  %907 = vrot.lane.b32.xlu0 %v885, 48
  %v908 = vpop.permute.xlu0 %907
  %909 = vrot.lane.b32.xlu0 %v886, 48
  %v910 = vpop.permute.xlu0 %909
  %911 = vrot.lane.b32.xlu0 %v887, 48
  %v912 = vpop.permute.xlu0 %911
  %913 = vrot.lane.b32.xlu0 %v888, 48
  %v914 = vpop.permute.xlu0 %913
  %915 = vrot.lane.b32.xlu0 %v889, 48
  %v916 = vpop.permute.xlu0 %915
  %vm917 = vcmask 392192
  %v918 = vsel %vm917, %v900, %v902
  %v919 = vsel %vm917, %v902, %v904
  %v920 = vsel %vm917, %v904, %v906
  %v921 = vsel %vm917, %v906, %v908
  %v922 = vsel %vm917, %v908, %v910
  %v923 = vsel %vm917, %v910, %v912
  %v924 = vsel %vm917, %v912, %v914
  %v925 = vsel %vm917, %v914, %v916
  %934 = vst [vmem:[#allocation2 + $0x3c0] sm:$0xff] %v918
  %935 = vst [vmem:[#allocation2 + $0x3c8] sm:$0xff] %v919
  %936 = vst [vmem:[#allocation2 + $0x3d0] sm:$0xff] %v920
  %937 = vst [vmem:[#allocation2 + $0x3d8] sm:$0xff] %v921
  %938 = vst [vmem:[#allocation2 + $0x3e0] sm:$0xff] %v922
  %939 = vst [vmem:[#allocation2 + $0x3e8] sm:$0xff] %v923
  %940 = vst [vmem:[#allocation2 + $0x3f0] sm:$0xff] %v924
  %941 = vst [vmem:[#allocation2 + $0x3f8] sm:$0xff] %v925
  %v942 = vld [vmem:[%s0] sm:$0xff]
  %v943 = vld [vmem:[%s0 + $0x8] sm:$0xff]
  %v944 = vld [vmem:[%s0 + $0x10] sm:$0xff]
  %v945 = vld [vmem:[%s0 + $0x18] sm:$0xff]
  %v946 = vld [vmem:[%s0 + $0x20] sm:$0xff]
  %v947 = vld [vmem:[%s0 + $0x28] sm:$0xff]
  %v948 = vld [vmem:[%s0 + $0x30] sm:$0xff]
  %v949 = vld [vmem:[%s0 + $0x38] sm:$0xff]
  %v950 = vld [vmem:[%s0 + $0x40] sm:$0xff]
  %960 = vrot.lane.b32.xlu0 %v942, 47
  %v961 = vpop.permute.xlu0 %960
  %962 = vrot.lane.b32.xlu0 %v943, 47
  %v963 = vpop.permute.xlu0 %962
  %964 = vrot.lane.b32.xlu0 %v944, 47
  %v965 = vpop.permute.xlu0 %964
  %966 = vrot.lane.b32.xlu0 %v945, 47
  %v967 = vpop.permute.xlu0 %966
  %968 = vrot.lane.b32.xlu0 %v946, 47
  %v969 = vpop.permute.xlu0 %968
  %970 = vrot.lane.b32.xlu0 %v947, 47
  %v971 = vpop.permute.xlu0 %970
  %972 = vrot.lane.b32.xlu0 %v948, 47
  %v973 = vpop.permute.xlu0 %972
  %974 = vrot.lane.b32.xlu0 %v949, 47
  %v975 = vpop.permute.xlu0 %974
  %976 = vrot.lane.b32.xlu0 %v950, 47
  %v977 = vpop.permute.xlu0 %976
  %vm978 = vcmask 384000
  %v979 = vsel %vm978, %v961, %v963
  %v980 = vsel %vm978, %v963, %v965
  %v981 = vsel %vm978, %v965, %v967
  %v982 = vsel %vm978, %v967, %v969
  %v983 = vsel %vm978, %v969, %v971
  %v984 = vsel %vm978, %v971, %v973
  %v985 = vsel %vm978, %v973, %v975
  %v986 = vsel %vm978, %v975, %v977
  %995 = vst [vmem:[#allocation2 + $0x400] sm:$0xff] %v979
  %996 = vst [vmem:[#allocation2 + $0x408] sm:$0xff] %v980
  %997 = vst [vmem:[#allocation2 + $0x410] sm:$0xff] %v981
  %998 = vst [vmem:[#allocation2 + $0x418] sm:$0xff] %v982
  %999 = vst [vmem:[#allocation2 + $0x420] sm:$0xff] %v983
  %1000 = vst [vmem:[#allocation2 + $0x428] sm:$0xff] %v984
  %1001 = vst [vmem:[#allocation2 + $0x430] sm:$0xff] %v985
  %1002 = vst [vmem:[#allocation2 + $0x438] sm:$0xff] %v986
  %v1003 = vld [vmem:[%s0] sm:$0xff]
  %v1004 = vld [vmem:[%s0 + $0x8] sm:$0xff]
  %v1005 = vld [vmem:[%s0 + $0x10] sm:$0xff]
  %v1006 = vld [vmem:[%s0 + $0x18] sm:$0xff]
  %v1007 = vld [vmem:[%s0 + $0x20] sm:$0xff]
  %v1008 = vld [vmem:[%s0 + $0x28] sm:$0xff]
  %v1009 = vld [vmem:[%s0 + $0x30] sm:$0xff]
  %v1010 = vld [vmem:[%s0 + $0x38] sm:$0xff]
  %v1011 = vld [vmem:[%s0 + $0x40] sm:$0xff]
  %1021 = vrot.lane.b32.xlu0 %v1003, 46
  %v1022 = vpop.permute.xlu0 %1021
  %1023 = vrot.lane.b32.xlu0 %v1004, 46
  %v1024 = vpop.permute.xlu0 %1023
  %1025 = vrot.lane.b32.xlu0 %v1005, 46
  %v1026 = vpop.permute.xlu0 %1025
  %1027 = vrot.lane.b32.xlu0 %v1006, 46
  %v1028 = vpop.permute.xlu0 %1027
  %1029 = vrot.lane.b32.xlu0 %v1007, 46
  %v1030 = vpop.permute.xlu0 %1029
  %1031 = vrot.lane.b32.xlu0 %v1008, 46
  %v1032 = vpop.permute.xlu0 %1031
  %1033 = vrot.lane.b32.xlu0 %v1009, 46
  %v1034 = vpop.permute.xlu0 %1033
  %1035 = vrot.lane.b32.xlu0 %v1010, 46
  %v1036 = vpop.permute.xlu0 %1035
  %1037 = vrot.lane.b32.xlu0 %v1011, 46
  %v1038 = vpop.permute.xlu0 %1037
  %vm1039 = vcmask 375808
  %v1040 = vsel %vm1039, %v1022, %v1024
  %v1041 = vsel %vm1039, %v1024, %v1026
  %v1042 = vsel %vm1039, %v1026, %v1028
  %v1043 = vsel %vm1039, %v1028, %v1030
  %v1044 = vsel %vm1039, %v1030, %v1032
  %v1045 = vsel %vm1039, %v1032, %v1034
  %v1046 = vsel %vm1039, %v1034, %v1036
  %v1047 = vsel %vm1039, %v1036, %v1038
  %1056 = vst [vmem:[#allocation2 + $0x440] sm:$0xff] %v1040
  %1057 = vst [vmem:[#allocation2 + $0x448] sm:$0xff] %v1041
  %1058 = vst [vmem:[#allocation2 + $0x450] sm:$0xff] %v1042
  %1059 = vst [vmem:[#allocation2 + $0x458] sm:$0xff] %v1043
  %1060 = vst [vmem:[#allocation2 + $0x460] sm:$0xff] %v1044
  %1061 = vst [vmem:[#allocation2 + $0x468] sm:$0xff] %v1045
  %1062 = vst [vmem:[#allocation2 + $0x470] sm:$0xff] %v1046
  %1063 = vst [vmem:[#allocation2 + $0x478] sm:$0xff] %v1047
  %v1064 = vld [vmem:[%s0 + $0x8] sm:$0xff]
  %v1065 = vld [vmem:[%s0 + $0x10] sm:$0xff]
  %v1066 = vld [vmem:[%s0 + $0x18] sm:$0xff]
  %v1067 = vld [vmem:[%s0 + $0x20] sm:$0xff]
  %v1068 = vld [vmem:[%s0 + $0x28] sm:$0xff]
  %v1069 = vld [vmem:[%s0 + $0x30] sm:$0xff]
  %v1070 = vld [vmem:[%s0 + $0x38] sm:$0xff]
  %v1071 = vld [vmem:[%s0 + $0x40] sm:$0xff]
  %1072 = vst [vmem:[#allocation2 + $0x480] sm:$0xff] %v1064
  %1073 = vst [vmem:[#allocation2 + $0x488] sm:$0xff] %v1065
  %1074 = vst [vmem:[#allocation2 + $0x490] sm:$0xff] %v1066
  %1075 = vst [vmem:[#allocation2 + $0x498] sm:$0xff] %v1067
  %1076 = vst [vmem:[#allocation2 + $0x4a0] sm:$0xff] %v1068
  %1077 = vst [vmem:[#allocation2 + $0x4a8] sm:$0xff] %v1069
  %1078 = vst [vmem:[#allocation2 + $0x4b0] sm:$0xff] %v1070
  %1079 = vst [vmem:[#allocation2 + $0x4b8] sm:$0xff] %v1071
  %v1080 = vld [vmem:[%s0 + $0x8] sm:$0xff]
  %v1081 = vld [vmem:[%s0 + $0x10] sm:$0xff]
  %v1082 = vld [vmem:[%s0 + $0x18] sm:$0xff]
  %v1083 = vld [vmem:[%s0 + $0x20] sm:$0xff]
  %v1084 = vld [vmem:[%s0 + $0x28] sm:$0xff]
  %v1085 = vld [vmem:[%s0 + $0x30] sm:$0xff]
  %v1086 = vld [vmem:[%s0 + $0x38] sm:$0xff]
  %v1087 = vld [vmem:[%s0 + $0x40] sm:$0xff]
  %v1088 = vld [vmem:[%s0 + $0x48] sm:$0xff]
  %1098 = vrot.lane.b32.xlu0 %v1080, 127
  %v1099 = vpop.permute.xlu0 %1098
  %1100 = vrot.lane.b32.xlu0 %v1081, 127
  %v1101 = vpop.permute.xlu0 %1100
  %1102 = vrot.lane.b32.xlu0 %v1082, 127
  %v1103 = vpop.permute.xlu0 %1102
  %1104 = vrot.lane.b32.xlu0 %v1083, 127
  %v1105 = vpop.permute.xlu0 %1104
  %1106 = vrot.lane.b32.xlu0 %v1084, 127
  %v1107 = vpop.permute.xlu0 %1106
  %1108 = vrot.lane.b32.xlu0 %v1085, 127
  %v1109 = vpop.permute.xlu0 %1108
  %1110 = vrot.lane.b32.xlu0 %v1086, 127
  %v1111 = vpop.permute.xlu0 %1110
  %1112 = vrot.lane.b32.xlu0 %v1087, 127
  %v1113 = vpop.permute.xlu0 %1112
  %1114 = vrot.lane.b32.xlu0 %v1088, 127
  %v1115 = vpop.permute.xlu0 %1114
  %v1116 = vsel %vm63, %v1099, %v1101
  %v1117 = vsel %vm63, %v1101, %v1103
  %v1118 = vsel %vm63, %v1103, %v1105
  %v1119 = vsel %vm63, %v1105, %v1107
  %v1120 = vsel %vm63, %v1107, %v1109
  %v1121 = vsel %vm63, %v1109, %v1111
  %v1122 = vsel %vm63, %v1111, %v1113
  %v1123 = vsel %vm63, %v1113, %v1115
  %1132 = vst [vmem:[#allocation2 + $0x4c0] sm:$0xff] %v1116
  %1133 = vst [vmem:[#allocation2 + $0x4c8] sm:$0xff] %v1117
  %1134 = vst [vmem:[#allocation2 + $0x4d0] sm:$0xff] %v1118
  %1135 = vst [vmem:[#allocation2 + $0x4d8] sm:$0xff] %v1119
  %1136 = vst [vmem:[#allocation2 + $0x4e0] sm:$0xff] %v1120
  %1137 = vst [vmem:[#allocation2 + $0x4e8] sm:$0xff] %v1121
  %1138 = vst [vmem:[#allocation2 + $0x4f0] sm:$0xff] %v1122
  %1139 = vst [vmem:[#allocation2 + $0x4f8] sm:$0xff] %v1123
  %v1140 = vld [vmem:[%s0 + $0x8] sm:$0xff]
  %v1141 = vld [vmem:[%s0 + $0x10] sm:$0xff]
  %v1142 = vld [vmem:[%s0 + $0x18] sm:$0xff]
  %v1143 = vld [vmem:[%s0 + $0x20] sm:$0xff]
  %v1144 = vld [vmem:[%s0 + $0x28] sm:$0xff]
  %v1145 = vld [vmem:[%s0 + $0x30] sm:$0xff]
  %v1146 = vld [vmem:[%s0 + $0x38] sm:$0xff]
  %v1147 = vld [vmem:[%s0 + $0x40] sm:$0xff]
  %v1148 = vld [vmem:[%s0 + $0x48] sm:$0xff]
  %1158 = vrot.lane.b32.xlu0 %v1140, 126
  %v1159 = vpop.permute.xlu0 %1158
  %1160 = vrot.lane.b32.xlu0 %v1141, 126
  %v1161 = vpop.permute.xlu0 %1160
  %1162 = vrot.lane.b32.xlu0 %v1142, 126
  %v1163 = vpop.permute.xlu0 %1162
  %1164 = vrot.lane.b32.xlu0 %v1143, 126
  %v1165 = vpop.permute.xlu0 %1164
  %1166 = vrot.lane.b32.xlu0 %v1144, 126
  %v1167 = vpop.permute.xlu0 %1166
  %1168 = vrot.lane.b32.xlu0 %v1145, 126
  %v1169 = vpop.permute.xlu0 %1168
  %1170 = vrot.lane.b32.xlu0 %v1146, 126
  %v1171 = vpop.permute.xlu0 %1170
  %1172 = vrot.lane.b32.xlu0 %v1147, 126
  %v1173 = vpop.permute.xlu0 %1172
  %1174 = vrot.lane.b32.xlu0 %v1148, 126
  %v1175 = vpop.permute.xlu0 %1174
  %v1176 = vsel %vm124, %v1159, %v1161
  %v1177 = vsel %vm124, %v1161, %v1163
  %v1178 = vsel %vm124, %v1163, %v1165
  %v1179 = vsel %vm124, %v1165, %v1167
  %v1180 = vsel %vm124, %v1167, %v1169
  %v1181 = vsel %vm124, %v1169, %v1171
  %v1182 = vsel %vm124, %v1171, %v1173
  %v1183 = vsel %vm124, %v1173, %v1175
  %1192 = vst [vmem:[#allocation2 + $0x500] sm:$0xff] %v1176
  %1193 = vst [vmem:[#allocation2 + $0x508] sm:$0xff] %v1177
  %1194 = vst [vmem:[#allocation2 + $0x510] sm:$0xff] %v1178
  %1195 = vst [vmem:[#allocation2 + $0x518] sm:$0xff] %v1179
  %1196 = vst [vmem:[#allocation2 + $0x520] sm:$0xff] %v1180
  %1197 = vst [vmem:[#allocation2 + $0x528] sm:$0xff] %v1181
  %1198 = vst [vmem:[#allocation2 + $0x530] sm:$0xff] %v1182
  %1199 = vst [vmem:[#allocation2 + $0x538] sm:$0xff] %v1183
  %v1200 = vld [vmem:[%s0 + $0x8] sm:$0xff]
  %v1201 = vld [vmem:[%s0 + $0x10] sm:$0xff]
  %v1202 = vld [vmem:[%s0 + $0x18] sm:$0xff]
  %v1203 = vld [vmem:[%s0 + $0x20] sm:$0xff]
  %v1204 = vld [vmem:[%s0 + $0x28] sm:$0xff]
  %v1205 = vld [vmem:[%s0 + $0x30] sm:$0xff]
  %v1206 = vld [vmem:[%s0 + $0x38] sm:$0xff]
  %v1207 = vld [vmem:[%s0 + $0x40] sm:$0xff]
  %v1208 = vld [vmem:[%s0 + $0x48] sm:$0xff]
  %1218 = vrot.lane.b32.xlu0 %v1200, 120
  %v1219 = vpop.permute.xlu0 %1218
  %1220 = vrot.lane.b32.xlu0 %v1201, 120
  %v1221 = vpop.permute.xlu0 %1220
  %1222 = vrot.lane.b32.xlu0 %v1202, 120
  %v1223 = vpop.permute.xlu0 %1222
  %1224 = vrot.lane.b32.xlu0 %v1203, 120
  %v1225 = vpop.permute.xlu0 %1224
  %1226 = vrot.lane.b32.xlu0 %v1204, 120
  %v1227 = vpop.permute.xlu0 %1226
  %1228 = vrot.lane.b32.xlu0 %v1205, 120
  %v1229 = vpop.permute.xlu0 %1228
  %1230 = vrot.lane.b32.xlu0 %v1206, 120
  %v1231 = vpop.permute.xlu0 %1230
  %1232 = vrot.lane.b32.xlu0 %v1207, 120
  %v1233 = vpop.permute.xlu0 %1232
  %1234 = vrot.lane.b32.xlu0 %v1208, 120
  %v1235 = vpop.permute.xlu0 %1234
  %v1236 = vsel %vm185, %v1219, %v1221
  %v1237 = vsel %vm185, %v1221, %v1223
  %v1238 = vsel %vm185, %v1223, %v1225
  %v1239 = vsel %vm185, %v1225, %v1227
  %v1240 = vsel %vm185, %v1227, %v1229
  %v1241 = vsel %vm185, %v1229, %v1231
  %v1242 = vsel %vm185, %v1231, %v1233
  %v1243 = vsel %vm185, %v1233, %v1235
  %1252 = vst [vmem:[#allocation2 + $0x540] sm:$0xff] %v1236
  %1253 = vst [vmem:[#allocation2 + $0x548] sm:$0xff] %v1237
  %1254 = vst [vmem:[#allocation2 + $0x550] sm:$0xff] %v1238
  %1255 = vst [vmem:[#allocation2 + $0x558] sm:$0xff] %v1239
  %1256 = vst [vmem:[#allocation2 + $0x560] sm:$0xff] %v1240
  %1257 = vst [vmem:[#allocation2 + $0x568] sm:$0xff] %v1241
  %1258 = vst [vmem:[#allocation2 + $0x570] sm:$0xff] %v1242
  %1259 = vst [vmem:[#allocation2 + $0x578] sm:$0xff] %v1243
  %v1260 = vld [vmem:[%s0 + $0x8] sm:$0xff]
  %v1261 = vld [vmem:[%s0 + $0x10] sm:$0xff]
  %v1262 = vld [vmem:[%s0 + $0x18] sm:$0xff]
  %v1263 = vld [vmem:[%s0 + $0x20] sm:$0xff]
  %v1264 = vld [vmem:[%s0 + $0x28] sm:$0xff]
  %v1265 = vld [vmem:[%s0 + $0x30] sm:$0xff]
  %v1266 = vld [vmem:[%s0 + $0x38] sm:$0xff]
  %v1267 = vld [vmem:[%s0 + $0x40] sm:$0xff]
  %v1268 = vld [vmem:[%s0 + $0x48] sm:$0xff]
  %1278 = vrot.lane.b32.xlu0 %v1260, 119
  %v1279 = vpop.permute.xlu0 %1278
  %1280 = vrot.lane.b32.xlu0 %v1261, 119
  %v1281 = vpop.permute.xlu0 %1280
  %1282 = vrot.lane.b32.xlu0 %v1262, 119
  %v1283 = vpop.permute.xlu0 %1282
  %1284 = vrot.lane.b32.xlu0 %v1263, 119
  %v1285 = vpop.permute.xlu0 %1284
  %1286 = vrot.lane.b32.xlu0 %v1264, 119
  %v1287 = vpop.permute.xlu0 %1286
  %1288 = vrot.lane.b32.xlu0 %v1265, 119
  %v1289 = vpop.permute.xlu0 %1288
  %1290 = vrot.lane.b32.xlu0 %v1266, 119
  %v1291 = vpop.permute.xlu0 %1290
  %1292 = vrot.lane.b32.xlu0 %v1267, 119
  %v1293 = vpop.permute.xlu0 %1292
  %1294 = vrot.lane.b32.xlu0 %v1268, 119
  %v1295 = vpop.permute.xlu0 %1294
  %v1296 = vsel %vm246, %v1279, %v1281
  %v1297 = vsel %vm246, %v1281, %v1283
  %v1298 = vsel %vm246, %v1283, %v1285
  %v1299 = vsel %vm246, %v1285, %v1287
  %v1300 = vsel %vm246, %v1287, %v1289
  %v1301 = vsel %vm246, %v1289, %v1291
  %v1302 = vsel %vm246, %v1291, %v1293
  %v1303 = vsel %vm246, %v1293, %v1295
  %1312 = vst [vmem:[#allocation2 + $0x580] sm:$0xff] %v1296
  %1313 = vst [vmem:[#allocation2 + $0x588] sm:$0xff] %v1297
  %1314 = vst [vmem:[#allocation2 + $0x590] sm:$0xff] %v1298
  %1315 = vst [vmem:[#allocation2 + $0x598] sm:$0xff] %v1299
  %1316 = vst [vmem:[#allocation2 + $0x5a0] sm:$0xff] %v1300
  %1317 = vst [vmem:[#allocation2 + $0x5a8] sm:$0xff] %v1301
  %1318 = vst [vmem:[#allocation2 + $0x5b0] sm:$0xff] %v1302
  %1319 = vst [vmem:[#allocation2 + $0x5b8] sm:$0xff] %v1303
  %v1320 = vld [vmem:[%s0 + $0x8] sm:$0xff]
  %v1321 = vld [vmem:[%s0 + $0x10] sm:$0xff]
  %v1322 = vld [vmem:[%s0 + $0x18] sm:$0xff]
  %v1323 = vld [vmem:[%s0 + $0x20] sm:$0xff]
  %v1324 = vld [vmem:[%s0 + $0x28] sm:$0xff]
  %v1325 = vld [vmem:[%s0 + $0x30] sm:$0xff]
  %v1326 = vld [vmem:[%s0 + $0x38] sm:$0xff]
  %v1327 = vld [vmem:[%s0 + $0x40] sm:$0xff]
  %v1328 = vld [vmem:[%s0 + $0x48] sm:$0xff]
  %1338 = vrot.lane.b32.xlu0 %v1320, 118
  %v1339 = vpop.permute.xlu0 %1338
  %1340 = vrot.lane.b32.xlu0 %v1321, 118
  %v1341 = vpop.permute.xlu0 %1340
  %1342 = vrot.lane.b32.xlu0 %v1322, 118
  %v1343 = vpop.permute.xlu0 %1342
  %1344 = vrot.lane.b32.xlu0 %v1323, 118
  %v1345 = vpop.permute.xlu0 %1344
  %1346 = vrot.lane.b32.xlu0 %v1324, 118
  %v1347 = vpop.permute.xlu0 %1346
  %1348 = vrot.lane.b32.xlu0 %v1325, 118
  %v1349 = vpop.permute.xlu0 %1348
  %1350 = vrot.lane.b32.xlu0 %v1326, 118
  %v1351 = vpop.permute.xlu0 %1350
  %1352 = vrot.lane.b32.xlu0 %v1327, 118
  %v1353 = vpop.permute.xlu0 %1352
  %1354 = vrot.lane.b32.xlu0 %v1328, 118
  %v1355 = vpop.permute.xlu0 %1354
  %v1356 = vsel %vm307, %v1339, %v1341
  %v1357 = vsel %vm307, %v1341, %v1343
  %v1358 = vsel %vm307, %v1343, %v1345
  %v1359 = vsel %vm307, %v1345, %v1347
  %v1360 = vsel %vm307, %v1347, %v1349
  %v1361 = vsel %vm307, %v1349, %v1351
  %v1362 = vsel %vm307, %v1351, %v1353
  %v1363 = vsel %vm307, %v1353, %v1355
  %1372 = vst [vmem:[#allocation2 + $0x5c0] sm:$0xff] %v1356
  %1373 = vst [vmem:[#allocation2 + $0x5c8] sm:$0xff] %v1357
  %1374 = vst [vmem:[#allocation2 + $0x5d0] sm:$0xff] %v1358
  %1375 = vst [vmem:[#allocation2 + $0x5d8] sm:$0xff] %v1359
  %1376 = vst [vmem:[#allocation2 + $0x5e0] sm:$0xff] %v1360
  %1377 = vst [vmem:[#allocation2 + $0x5e8] sm:$0xff] %v1361
  %1378 = vst [vmem:[#allocation2 + $0x5f0] sm:$0xff] %v1362
  %1379 = vst [vmem:[#allocation2 + $0x5f8] sm:$0xff] %v1363
  %v1380 = vld [vmem:[%s0 + $0x8] sm:$0xff]
  %v1381 = vld [vmem:[%s0 + $0x10] sm:$0xff]
  %v1382 = vld [vmem:[%s0 + $0x18] sm:$0xff]
  %v1383 = vld [vmem:[%s0 + $0x20] sm:$0xff]
  %v1384 = vld [vmem:[%s0 + $0x28] sm:$0xff]
  %v1385 = vld [vmem:[%s0 + $0x30] sm:$0xff]
  %v1386 = vld [vmem:[%s0 + $0x38] sm:$0xff]
  %v1387 = vld [vmem:[%s0 + $0x40] sm:$0xff]
  %v1388 = vld [vmem:[%s0 + $0x48] sm:$0xff]
  %1398 = vrot.lane.b32.xlu0 %v1380, 112
  %v1399 = vpop.permute.xlu0 %1398
  %1400 = vrot.lane.b32.xlu0 %v1381, 112
  %v1401 = vpop.permute.xlu0 %1400
  %1402 = vrot.lane.b32.xlu0 %v1382, 112
  %v1403 = vpop.permute.xlu0 %1402
  %1404 = vrot.lane.b32.xlu0 %v1383, 112
  %v1405 = vpop.permute.xlu0 %1404
  %1406 = vrot.lane.b32.xlu0 %v1384, 112
  %v1407 = vpop.permute.xlu0 %1406
  %1408 = vrot.lane.b32.xlu0 %v1385, 112
  %v1409 = vpop.permute.xlu0 %1408
  %1410 = vrot.lane.b32.xlu0 %v1386, 112
  %v1411 = vpop.permute.xlu0 %1410
  %1412 = vrot.lane.b32.xlu0 %v1387, 112
  %v1413 = vpop.permute.xlu0 %1412
  %1414 = vrot.lane.b32.xlu0 %v1388, 112
  %v1415 = vpop.permute.xlu0 %1414
  %v1416 = vsel %vm368, %v1399, %v1401
  %v1417 = vsel %vm368, %v1401, %v1403
  %v1418 = vsel %vm368, %v1403, %v1405
  %v1419 = vsel %vm368, %v1405, %v1407
  %v1420 = vsel %vm368, %v1407, %v1409
  %v1421 = vsel %vm368, %v1409, %v1411
  %v1422 = vsel %vm368, %v1411, %v1413
  %v1423 = vsel %vm368, %v1413, %v1415
  %1432 = vst [vmem:[#allocation2 + $0x600] sm:$0xff] %v1416
  %1433 = vst [vmem:[#allocation2 + $0x608] sm:$0xff] %v1417
  %1434 = vst [vmem:[#allocation2 + $0x610] sm:$0xff] %v1418
  %1435 = vst [vmem:[#allocation2 + $0x618] sm:$0xff] %v1419
  %1436 = vst [vmem:[#allocation2 + $0x620] sm:$0xff] %v1420
  %1437 = vst [vmem:[#allocation2 + $0x628] sm:$0xff] %v1421
  %1438 = vst [vmem:[#allocation2 + $0x630] sm:$0xff] %v1422
  %1439 = vst [vmem:[#allocation2 + $0x638] sm:$0xff] %v1423
  %v1440 = vld [vmem:[%s0 + $0x8] sm:$0xff]
  %v1441 = vld [vmem:[%s0 + $0x10] sm:$0xff]
  %v1442 = vld [vmem:[%s0 + $0x18] sm:$0xff]
  %v1443 = vld [vmem:[%s0 + $0x20] sm:$0xff]
  %v1444 = vld [vmem:[%s0 + $0x28] sm:$0xff]
  %v1445 = vld [vmem:[%s0 + $0x30] sm:$0xff]
  %v1446 = vld [vmem:[%s0 + $0x38] sm:$0xff]
  %v1447 = vld [vmem:[%s0 + $0x40] sm:$0xff]
  %v1448 = vld [vmem:[%s0 + $0x48] sm:$0xff]
  %1458 = vrot.lane.b32.xlu0 %v1440, 111
  %v1459 = vpop.permute.xlu0 %1458
  %1460 = vrot.lane.b32.xlu0 %v1441, 111
  %v1461 = vpop.permute.xlu0 %1460
  %1462 = vrot.lane.b32.xlu0 %v1442, 111
  %v1463 = vpop.permute.xlu0 %1462
  %1464 = vrot.lane.b32.xlu0 %v1443, 111
  %v1465 = vpop.permute.xlu0 %1464
  %1466 = vrot.lane.b32.xlu0 %v1444, 111
  %v1467 = vpop.permute.xlu0 %1466
  %1468 = vrot.lane.b32.xlu0 %v1445, 111
  %v1469 = vpop.permute.xlu0 %1468
  %1470 = vrot.lane.b32.xlu0 %v1446, 111
  %v1471 = vpop.permute.xlu0 %1470
  %1472 = vrot.lane.b32.xlu0 %v1447, 111
  %v1473 = vpop.permute.xlu0 %1472
  %1474 = vrot.lane.b32.xlu0 %v1448, 111
  %v1475 = vpop.permute.xlu0 %1474
  %v1476 = vsel %vm429, %v1459, %v1461
  %v1477 = vsel %vm429, %v1461, %v1463
  %v1478 = vsel %vm429, %v1463, %v1465
  %v1479 = vsel %vm429, %v1465, %v1467
  %v1480 = vsel %vm429, %v1467, %v1469
  %v1481 = vsel %vm429, %v1469, %v1471
  %v1482 = vsel %vm429, %v1471, %v1473
  %v1483 = vsel %vm429, %v1473, %v1475
  %1492 = vst [vmem:[#allocation2 + $0x640] sm:$0xff] %v1476
  %1493 = vst [vmem:[#allocation2 + $0x648] sm:$0xff] %v1477
  %1494 = vst [vmem:[#allocation2 + $0x650] sm:$0xff] %v1478
  %1495 = vst [vmem:[#allocation2 + $0x658] sm:$0xff] %v1479
  %1496 = vst [vmem:[#allocation2 + $0x660] sm:$0xff] %v1480
  %1497 = vst [vmem:[#allocation2 + $0x668] sm:$0xff] %v1481
  %1498 = vst [vmem:[#allocation2 + $0x670] sm:$0xff] %v1482
  %1499 = vst [vmem:[#allocation2 + $0x678] sm:$0xff] %v1483
  %v1500 = vld [vmem:[%s0 + $0x8] sm:$0xff]
  %v1501 = vld [vmem:[%s0 + $0x10] sm:$0xff]
  %v1502 = vld [vmem:[%s0 + $0x18] sm:$0xff]
  %v1503 = vld [vmem:[%s0 + $0x20] sm:$0xff]
  %v1504 = vld [vmem:[%s0 + $0x28] sm:$0xff]
  %v1505 = vld [vmem:[%s0 + $0x30] sm:$0xff]
  %v1506 = vld [vmem:[%s0 + $0x38] sm:$0xff]
  %v1507 = vld [vmem:[%s0 + $0x40] sm:$0xff]
  %v1508 = vld [vmem:[%s0 + $0x48] sm:$0xff]
  %1518 = vrot.lane.b32.xlu0 %v1500, 110
  %v1519 = vpop.permute.xlu0 %1518
  %1520 = vrot.lane.b32.xlu0 %v1501, 110
  %v1521 = vpop.permute.xlu0 %1520
  %1522 = vrot.lane.b32.xlu0 %v1502, 110
  %v1523 = vpop.permute.xlu0 %1522
  %1524 = vrot.lane.b32.xlu0 %v1503, 110
  %v1525 = vpop.permute.xlu0 %1524
  %1526 = vrot.lane.b32.xlu0 %v1504, 110
  %v1527 = vpop.permute.xlu0 %1526
  %1528 = vrot.lane.b32.xlu0 %v1505, 110
  %v1529 = vpop.permute.xlu0 %1528
  %1530 = vrot.lane.b32.xlu0 %v1506, 110
  %v1531 = vpop.permute.xlu0 %1530
  %1532 = vrot.lane.b32.xlu0 %v1507, 110
  %v1533 = vpop.permute.xlu0 %1532
  %1534 = vrot.lane.b32.xlu0 %v1508, 110
  %v1535 = vpop.permute.xlu0 %1534
  %v1536 = vsel %vm490, %v1519, %v1521
  %v1537 = vsel %vm490, %v1521, %v1523
  %v1538 = vsel %vm490, %v1523, %v1525
  %v1539 = vsel %vm490, %v1525, %v1527
  %v1540 = vsel %vm490, %v1527, %v1529
  %v1541 = vsel %vm490, %v1529, %v1531
  %v1542 = vsel %vm490, %v1531, %v1533
  %v1543 = vsel %vm490, %v1533, %v1535
  %1552 = vst [vmem:[#allocation2 + $0x680] sm:$0xff] %v1536
  %1553 = vst [vmem:[#allocation2 + $0x688] sm:$0xff] %v1537
  %1554 = vst [vmem:[#allocation2 + $0x690] sm:$0xff] %v1538
  %1555 = vst [vmem:[#allocation2 + $0x698] sm:$0xff] %v1539
  %1556 = vst [vmem:[#allocation2 + $0x6a0] sm:$0xff] %v1540
  %1557 = vst [vmem:[#allocation2 + $0x6a8] sm:$0xff] %v1541
  %1558 = vst [vmem:[#allocation2 + $0x6b0] sm:$0xff] %v1542
  %1559 = vst [vmem:[#allocation2 + $0x6b8] sm:$0xff] %v1543
  %v1560 = vld [vmem:[%s1] sm:$0xff]
  %v1561 = vld [vmem:[%s1 + $0x8] sm:$0xff]
  %v1562 = vld [vmem:[#allocation2] sm:$0xff]
  %v1563 = vld [vmem:[#allocation2 + $0x8] sm:$0xff]
  %v1564 = vld [vmem:[#allocation2 + $0x10] sm:$0xff]
  %v1565 = vld [vmem:[#allocation2 + $0x18] sm:$0xff]
  %v1566 = vld [vmem:[#allocation2 + $0x20] sm:$0xff]
  %v1567 = vld [vmem:[#allocation2 + $0x28] sm:$0xff]
  %v1568 = vld [vmem:[#allocation2 + $0x30] sm:$0xff]
  %v1569 = vld [vmem:[#allocation2 + $0x38] sm:$0xff]
  %v1570 = vld [vmem:[#allocation2 + $0x40] sm:$0xff]
  %v1571 = vld [vmem:[#allocation2 + $0x48] sm:$0xff]
  %v1572 = vld [vmem:[#allocation2 + $0x50] sm:$0xff]
  %v1573 = vld [vmem:[#allocation2 + $0x58] sm:$0xff]
  %v1574 = vld [vmem:[#allocation2 + $0x60] sm:$0xff]
  %v1575 = vld [vmem:[#allocation2 + $0x68] sm:$0xff]
  %v1576 = vld [vmem:[#allocation2 + $0x70] sm:$0xff]
  %v1577 = vld [vmem:[#allocation2 + $0x78] sm:$0xff]
  %v1578 = vld [vmem:[#allocation2 + $0x80] sm:$0xff]
  %v1579 = vld [vmem:[#allocation2 + $0x88] sm:$0xff]
  %v1580 = vld [vmem:[#allocation2 + $0x90] sm:$0xff]
  %v1581 = vld [vmem:[#allocation2 + $0x98] sm:$0xff]
  %v1582 = vld [vmem:[#allocation2 + $0xa0] sm:$0xff]
  %v1583 = vld [vmem:[#allocation2 + $0xa8] sm:$0xff]
  %v1584 = vld [vmem:[#allocation2 + $0xb0] sm:$0xff]
  %v1585 = vld [vmem:[#allocation2 + $0xb8] sm:$0xff]
  %v1586 = vld [vmem:[#allocation2 + $0xc0] sm:$0xff]
  %v1587 = vld [vmem:[#allocation2 + $0xc8] sm:$0xff]
  %v1588 = vld [vmem:[#allocation2 + $0xd0] sm:$0xff]
  %v1589 = vld [vmem:[#allocation2 + $0xd8] sm:$0xff]
  %v1590 = vld [vmem:[#allocation2 + $0xe0] sm:$0xff]
  %v1591 = vld [vmem:[#allocation2 + $0xe8] sm:$0xff]
  %v1592 = vld [vmem:[#allocation2 + $0xf0] sm:$0xff]
  %v1593 = vld [vmem:[#allocation2 + $0xf8] sm:$0xff]
  %v1594 = vld [vmem:[#allocation2 + $0x100] sm:$0xff]
  %v1595 = vld [vmem:[#allocation2 + $0x108] sm:$0xff]
  %v1596 = vld [vmem:[#allocation2 + $0x110] sm:$0xff]
  %v1597 = vld [vmem:[#allocation2 + $0x118] sm:$0xff]
  %v1598 = vld [vmem:[#allocation2 + $0x120] sm:$0xff]
  %v1599 = vld [vmem:[#allocation2 + $0x128] sm:$0xff]
  %v1600 = vld [vmem:[#allocation2 + $0x130] sm:$0xff]
  %v1601 = vld [vmem:[#allocation2 + $0x138] sm:$0xff]
  %v1602 = vld [vmem:[#allocation2 + $0x140] sm:$0xff]
  %v1603 = vld [vmem:[#allocation2 + $0x148] sm:$0xff]
  %v1604 = vld [vmem:[#allocation2 + $0x150] sm:$0xff]
  %v1605 = vld [vmem:[#allocation2 + $0x158] sm:$0xff]
  %v1606 = vld [vmem:[#allocation2 + $0x160] sm:$0xff]
  %v1607 = vld [vmem:[#allocation2 + $0x168] sm:$0xff]
  %v1608 = vld [vmem:[#allocation2 + $0x170] sm:$0xff]
  %v1609 = vld [vmem:[#allocation2 + $0x178] sm:$0xff]
  %v1610 = vld [vmem:[#allocation2 + $0x180] sm:$0xff]
  %v1611 = vld [vmem:[#allocation2 + $0x188] sm:$0xff]
  %v1612 = vld [vmem:[#allocation2 + $0x190] sm:$0xff]
  %v1613 = vld [vmem:[#allocation2 + $0x198] sm:$0xff]
  %v1614 = vld [vmem:[#allocation2 + $0x1a0] sm:$0xff]
  %v1615 = vld [vmem:[#allocation2 + $0x1a8] sm:$0xff]
  %v1616 = vld [vmem:[#allocation2 + $0x1b0] sm:$0xff]
  %v1617 = vld [vmem:[#allocation2 + $0x1b8] sm:$0xff]
  %v1618 = vld [vmem:[#allocation2 + $0x1c0] sm:$0xff]
  %v1619 = vld [vmem:[#allocation2 + $0x1c8] sm:$0xff]
  %v1620 = vld [vmem:[#allocation2 + $0x1d0] sm:$0xff]
  %v1621 = vld [vmem:[#allocation2 + $0x1d8] sm:$0xff]
  %v1622 = vld [vmem:[#allocation2 + $0x1e0] sm:$0xff]
  %v1623 = vld [vmem:[#allocation2 + $0x1e8] sm:$0xff]
  %v1624 = vld [vmem:[#allocation2 + $0x1f0] sm:$0xff]
  %v1625 = vld [vmem:[#allocation2 + $0x1f8] sm:$0xff]
  %v1626 = vld [vmem:[#allocation2 + $0x200] sm:$0xff]
  %v1627 = vld [vmem:[#allocation2 + $0x208] sm:$0xff]
  %v1628 = vld [vmem:[#allocation2 + $0x210] sm:$0xff]
  %v1629 = vld [vmem:[#allocation2 + $0x218] sm:$0xff]
  %v1630 = vld [vmem:[#allocation2 + $0x220] sm:$0xff]
  %v1631 = vld [vmem:[#allocation2 + $0x228] sm:$0xff]
  %v1632 = vld [vmem:[#allocation2 + $0x230] sm:$0xff]
  %v1633 = vld [vmem:[#allocation2 + $0x238] sm:$0xff]
  %v1634 = vld [vmem:[#allocation2 + $0x240] sm:$0xff]
  %v1635 = vld [vmem:[#allocation2 + $0x248] sm:$0xff]
  %v1636 = vld [vmem:[#allocation2 + $0x250] sm:$0xff]
  %v1637 = vld [vmem:[#allocation2 + $0x258] sm:$0xff]
  %v1638 = vld [vmem:[#allocation2 + $0x260] sm:$0xff]
  %v1639 = vld [vmem:[#allocation2 + $0x268] sm:$0xff]
  %v1640 = vld [vmem:[#allocation2 + $0x270] sm:$0xff]
  %v1641 = vld [vmem:[#allocation2 + $0x278] sm:$0xff]
  %v1642 = vld [vmem:[#allocation2 + $0x280] sm:$0xff]
  %v1643 = vld [vmem:[#allocation2 + $0x288] sm:$0xff]
  %v1644 = vld [vmem:[#allocation2 + $0x290] sm:$0xff]
  %v1645 = vld [vmem:[#allocation2 + $0x298] sm:$0xff]
  %v1646 = vld [vmem:[#allocation2 + $0x2a0] sm:$0xff]
  %v1647 = vld [vmem:[#allocation2 + $0x2a8] sm:$0xff]
  %v1648 = vld [vmem:[#allocation2 + $0x2b0] sm:$0xff]
  %v1649 = vld [vmem:[#allocation2 + $0x2b8] sm:$0xff]
  %v1650 = vld [vmem:[#allocation2 + $0x2c0] sm:$0xff]
  %v1651 = vld [vmem:[#allocation2 + $0x2c8] sm:$0xff]
  %v1652 = vld [vmem:[#allocation2 + $0x2d0] sm:$0xff]
  %v1653 = vld [vmem:[#allocation2 + $0x2d8] sm:$0xff]
  %v1654 = vld [vmem:[#allocation2 + $0x2e0] sm:$0xff]
  %v1655 = vld [vmem:[#allocation2 + $0x2e8] sm:$0xff]
  %v1656 = vld [vmem:[#allocation2 + $0x2f0] sm:$0xff]
  %v1657 = vld [vmem:[#allocation2 + $0x2f8] sm:$0xff]
  %v1658 = vld [vmem:[#allocation2 + $0x300] sm:$0xff]
  %v1659 = vld [vmem:[#allocation2 + $0x308] sm:$0xff]
  %v1660 = vld [vmem:[#allocation2 + $0x310] sm:$0xff]
  %v1661 = vld [vmem:[#allocation2 + $0x318] sm:$0xff]
  %v1662 = vld [vmem:[#allocation2 + $0x320] sm:$0xff]
  %v1663 = vld [vmem:[#allocation2 + $0x328] sm:$0xff]
  %v1664 = vld [vmem:[#allocation2 + $0x330] sm:$0xff]
  %v1665 = vld [vmem:[#allocation2 + $0x338] sm:$0xff]
  %v1666 = vld [vmem:[#allocation2 + $0x340] sm:$0xff]
  %v1667 = vld [vmem:[#allocation2 + $0x348] sm:$0xff]
  %v1668 = vld [vmem:[#allocation2 + $0x350] sm:$0xff]
  %v1669 = vld [vmem:[#allocation2 + $0x358] sm:$0xff]
  %v1670 = vld [vmem:[#allocation2 + $0x360] sm:$0xff]
  %v1671 = vld [vmem:[#allocation2 + $0x368] sm:$0xff]
  %v1672 = vld [vmem:[#allocation2 + $0x370] sm:$0xff]
  %v1673 = vld [vmem:[#allocation2 + $0x378] sm:$0xff]
  %v1674 = vld [vmem:[#allocation2 + $0x380] sm:$0xff]
  %v1675 = vld [vmem:[#allocation2 + $0x388] sm:$0xff]
  %v1676 = vld [vmem:[#allocation2 + $0x390] sm:$0xff]
  %v1677 = vld [vmem:[#allocation2 + $0x398] sm:$0xff]
  %v1678 = vld [vmem:[#allocation2 + $0x3a0] sm:$0xff]
  %v1679 = vld [vmem:[#allocation2 + $0x3a8] sm:$0xff]
  %v1680 = vld [vmem:[#allocation2 + $0x3b0] sm:$0xff]
  %v1681 = vld [vmem:[#allocation2 + $0x3b8] sm:$0xff]
  %v1682 = vld [vmem:[#allocation2 + $0x3c0] sm:$0xff]
  %v1683 = vld [vmem:[#allocation2 + $0x3c8] sm:$0xff]
  %v1684 = vld [vmem:[#allocation2 + $0x3d0] sm:$0xff]
  %v1685 = vld [vmem:[#allocation2 + $0x3d8] sm:$0xff]
  %v1686 = vld [vmem:[#allocation2 + $0x3e0] sm:$0xff]
  %v1687 = vld [vmem:[#allocation2 + $0x3e8] sm:$0xff]
  %v1688 = vld [vmem:[#allocation2 + $0x3f0] sm:$0xff]
  %v1689 = vld [vmem:[#allocation2 + $0x3f8] sm:$0xff]
  %v1690 = vld [vmem:[#allocation2 + $0x400] sm:$0xff]
  %v1691 = vld [vmem:[#allocation2 + $0x408] sm:$0xff]
  %v1692 = vld [vmem:[#allocation2 + $0x410] sm:$0xff]
  %v1693 = vld [vmem:[#allocation2 + $0x418] sm:$0xff]
  %v1694 = vld [vmem:[#allocation2 + $0x420] sm:$0xff]
  %v1695 = vld [vmem:[#allocation2 + $0x428] sm:$0xff]
  %v1696 = vld [vmem:[#allocation2 + $0x430] sm:$0xff]
  %v1697 = vld [vmem:[#allocation2 + $0x438] sm:$0xff]
  %v1698 = vld [vmem:[#allocation2 + $0x440] sm:$0xff]
  %v1699 = vld [vmem:[#allocation2 + $0x448] sm:$0xff]
  %v1700 = vld [vmem:[#allocation2 + $0x450] sm:$0xff]
  %v1701 = vld [vmem:[#allocation2 + $0x458] sm:$0xff]
  %v1702 = vld [vmem:[#allocation2 + $0x460] sm:$0xff]
  %v1703 = vld [vmem:[#allocation2 + $0x468] sm:$0xff]
  %v1704 = vld [vmem:[#allocation2 + $0x470] sm:$0xff]
  %v1705 = vld [vmem:[#allocation2 + $0x478] sm:$0xff]
  %v1706 = vld [vmem:[#allocation2 + $0x480] sm:$0xff]
  %v1707 = vld [vmem:[#allocation2 + $0x488] sm:$0xff]
  %v1708 = vld [vmem:[#allocation2 + $0x490] sm:$0xff]
  %v1709 = vld [vmem:[#allocation2 + $0x498] sm:$0xff]
  %v1710 = vld [vmem:[#allocation2 + $0x4a0] sm:$0xff]
  %v1711 = vld [vmem:[#allocation2 + $0x4a8] sm:$0xff]
  %v1712 = vld [vmem:[#allocation2 + $0x4b0] sm:$0xff]
  %v1713 = vld [vmem:[#allocation2 + $0x4b8] sm:$0xff]
  %v1714 = vld [vmem:[#allocation2 + $0x4c0] sm:$0xff]
  %v1715 = vld [vmem:[#allocation2 + $0x4c8] sm:$0xff]
  %v1716 = vld [vmem:[#allocation2 + $0x4d0] sm:$0xff]
  %v1717 = vld [vmem:[#allocation2 + $0x4d8] sm:$0xff]
  %v1718 = vld [vmem:[#allocation2 + $0x4e0] sm:$0xff]
  %v1719 = vld [vmem:[#allocation2 + $0x4e8] sm:$0xff]
  %v1720 = vld [vmem:[#allocation2 + $0x4f0] sm:$0xff]
  %v1721 = vld [vmem:[#allocation2 + $0x4f8] sm:$0xff]
  %v1722 = vld [vmem:[#allocation2 + $0x500] sm:$0xff]
  %v1723 = vld [vmem:[#allocation2 + $0x508] sm:$0xff]
  %v1724 = vld [vmem:[#allocation2 + $0x510] sm:$0xff]
  %v1725 = vld [vmem:[#allocation2 + $0x518] sm:$0xff]
  %v1726 = vld [vmem:[#allocation2 + $0x520] sm:$0xff]
  %v1727 = vld [vmem:[#allocation2 + $0x528] sm:$0xff]
  %v1728 = vld [vmem:[#allocation2 + $0x530] sm:$0xff]
  %v1729 = vld [vmem:[#allocation2 + $0x538] sm:$0xff]
  %v1730 = vld [vmem:[#allocation2 + $0x540] sm:$0xff]
  %v1731 = vld [vmem:[#allocation2 + $0x548] sm:$0xff]
  %v1732 = vld [vmem:[#allocation2 + $0x550] sm:$0xff]
  %v1733 = vld [vmem:[#allocation2 + $0x558] sm:$0xff]
  %v1734 = vld [vmem:[#allocation2 + $0x560] sm:$0xff]
  %v1735 = vld [vmem:[#allocation2 + $0x568] sm:$0xff]
  %v1736 = vld [vmem:[#allocation2 + $0x570] sm:$0xff]
  %v1737 = vld [vmem:[#allocation2 + $0x578] sm:$0xff]
  %v1738 = vld [vmem:[#allocation2 + $0x580] sm:$0xff]
  %v1739 = vld [vmem:[#allocation2 + $0x588] sm:$0xff]
  %v1740 = vld [vmem:[#allocation2 + $0x590] sm:$0xff]
  %v1741 = vld [vmem:[#allocation2 + $0x598] sm:$0xff]
  %v1742 = vld [vmem:[#allocation2 + $0x5a0] sm:$0xff]
  %v1743 = vld [vmem:[#allocation2 + $0x5a8] sm:$0xff]
  %v1744 = vld [vmem:[#allocation2 + $0x5b0] sm:$0xff]
  %v1745 = vld [vmem:[#allocation2 + $0x5b8] sm:$0xff]
  %v1746 = vld [vmem:[#allocation2 + $0x5c0] sm:$0xff]
  %v1747 = vld [vmem:[#allocation2 + $0x5c8] sm:$0xff]
  %v1748 = vld [vmem:[#allocation2 + $0x5d0] sm:$0xff]
  %v1749 = vld [vmem:[#allocation2 + $0x5d8] sm:$0xff]
  %v1750 = vld [vmem:[#allocation2 + $0x5e0] sm:$0xff]
  %v1751 = vld [vmem:[#allocation2 + $0x5e8] sm:$0xff]
  %v1752 = vld [vmem:[#allocation2 + $0x5f0] sm:$0xff]
  %v1753 = vld [vmem:[#allocation2 + $0x5f8] sm:$0xff]
  %v1754 = vld [vmem:[#allocation2 + $0x600] sm:$0xff]
  %v1755 = vld [vmem:[#allocation2 + $0x608] sm:$0xff]
  %v1756 = vld [vmem:[#allocation2 + $0x610] sm:$0xff]
  %v1757 = vld [vmem:[#allocation2 + $0x618] sm:$0xff]
  %v1758 = vld [vmem:[#allocation2 + $0x620] sm:$0xff]
  %v1759 = vld [vmem:[#allocation2 + $0x628] sm:$0xff]
  %v1760 = vld [vmem:[#allocation2 + $0x630] sm:$0xff]
  %v1761 = vld [vmem:[#allocation2 + $0x638] sm:$0xff]
  %v1762 = vld [vmem:[#allocation2 + $0x640] sm:$0xff]
  %v1763 = vld [vmem:[#allocation2 + $0x648] sm:$0xff]
  %v1764 = vld [vmem:[#allocation2 + $0x650] sm:$0xff]
  %v1765 = vld [vmem:[#allocation2 + $0x658] sm:$0xff]
  %v1766 = vld [vmem:[#allocation2 + $0x660] sm:$0xff]
  %v1767 = vld [vmem:[#allocation2 + $0x668] sm:$0xff]
  %v1768 = vld [vmem:[#allocation2 + $0x670] sm:$0xff]
  %v1769 = vld [vmem:[#allocation2 + $0x678] sm:$0xff]
  %v1770 = vld [vmem:[#allocation2 + $0x680] sm:$0xff]
  %v1771 = vld [vmem:[#allocation2 + $0x688] sm:$0xff]
  %v1772 = vld [vmem:[#allocation2 + $0x690] sm:$0xff]
  %v1773 = vld [vmem:[#allocation2 + $0x698] sm:$0xff]
  %v1774 = vld [vmem:[#allocation2 + $0x6a0] sm:$0xff]
  %v1775 = vld [vmem:[#allocation2 + $0x6a8] sm:$0xff]
  %v1776 = vld [vmem:[#allocation2 + $0x6b0] sm:$0xff]
  %v1777 = vld [vmem:[#allocation2 + $0x6b8] sm:$0xff]
  %vm1778 = vcmask 719872
  %v1780 = vsel %vm1778, %v1561, 0
  %1782 = vmatprep.subr.mxu0 %v1683
  %1783 = vmatpush1.msra.mxu0 %v1682
  %1784 = vmatprep.subr.mxu0 %v1675
  %1785 = vmatpush1.msra.mxu0 %v1674
  %1786 = vmatprep.subr.mxu0 %v1667
  %1787 = vmatpush1.msra.mxu0 %v1666
  %1788 = vmatprep.subr.mxu0 %v1659
  %1789 = vmatpush1.msra.mxu0 %v1658
  %1790 = vmatprep.subr.mxu0 %v1651
  %1791 = vmatpush1.msra.mxu0 %v1650
  %1792 = vmatprep.subr.mxu0 %v1643
  %1793 = vmatpush1.msra.mxu0 %v1642
  %1794 = vmatprep.subr.mxu0 %v1635
  %1795 = vmatpush1.msra.mxu0 %v1634
  %1796 = vmatprep.subr.mxu0 %v1627
  %1797 = vmatpush1.msra.mxu0 %v1626
  %1798 = vmatprep.subr.mxu0 %v1619
  %1799 = vmatpush1.msra.mxu0 %v1618
  %1800 = vmatprep.subr.mxu0 %v1611
  %1801 = vmatpush1.msra.mxu0 %v1610
  %1802 = vmatprep.subr.mxu0 %v1603
  %1803 = vmatpush1.msra.mxu0 %v1602
  %1804 = vmatprep.subr.mxu0 %v1595
  %1805 = vmatpush1.msra.mxu0 %v1594
  %1806 = vmatprep.subr.mxu0 %v1587
  %1807 = vmatpush1.msra.mxu0 %v1586
  %1808 = vmatprep.subr.mxu0 %v1579
  %1809 = vmatpush1.msra.mxu0 %v1578
  %1810 = vmatprep.subr.mxu0 %v1571
  %1811 = vmatpush1.msra.mxu0 %v1570
  %1812 = vmatprep.subr.mxu0 %v1563
  %1813 = vmatpush1.msra.mxu0 %v1562
  %1814 = vmatprep.subr.mxu0 0.0
  %1815 = vmatpush2.msra.mxu0 0.0
  %1816 = vmatprep.subr.mxu0 0.0
  %1817 = vmatpush2.msra.mxu0 0.0
  %1818 = vmatprep.subr.mxu0 0.0
  %1819 = vmatpush2.msra.mxu0 0.0
  %1820 = vmatprep.subr.mxu0 0.0
  %1821 = vmatpush2.msra.mxu0 0.0
  %1822 = vmatprep.subr.mxu0 0.0
  %1823 = vmatpush2.msra.mxu0 0.0
  %1824 = vmatprep.subr.mxu0 %v1771
  %1825 = vmatpush2.msra.mxu0 %v1770
  %1826 = vmatprep.subr.mxu0 %v1763
  %1827 = vmatpush2.msra.mxu0 %v1762
  %1828 = vmatprep.subr.mxu0 %v1755
  %1829 = vmatpush2.msra.mxu0 %v1754
  %1830 = vmatprep.subr.mxu0 %v1747
  %1831 = vmatpush2.msra.mxu0 %v1746
  %1832 = vmatprep.subr.mxu0 %v1739
  %1833 = vmatpush2.msra.mxu0 %v1738
  %1834 = vmatprep.subr.mxu0 %v1731
  %1835 = vmatpush2.msra.mxu0 %v1730
  %1836 = vmatprep.subr.mxu0 %v1723
  %1837 = vmatpush2.msra.mxu0 %v1722
  %1838 = vmatprep.subr.mxu0 %v1715
  %1839 = vmatpush2.msra.mxu0 %v1714
  %1840 = vmatprep.subr.mxu0 %v1707
  %1841 = vmatpush2.msra.mxu0 %v1706
  %1842 = vmatprep.subr.mxu0 %v1699
  %1843 = vmatpush2.msra.mxu0 %v1698
  %1844 = vmatprep.subr.mxu0 %v1691
  %1845 = vmatpush2.msra.mxu0 %v1690
  %1846 = vmatprep.mubr.f32.mxu0 %v1780
  %1847 = vmatmul.mubr.f32.gmra.mxu0 %v1560
  %v1848 = vpop.f32.mrf.mxu0
  %v1849 = vadd.f32 0.0, %v1848
  %v1850 = vpop.f32.mrf.mxu0
  %v1851 = vadd.f32 0.0, %v1850
  %1852 = vdwg.mxu0
  %1853 = vmatprep.subr.mxu0 %v1685
  %1854 = vmatpush1.msra.mxu0 %v1684
  %1855 = vmatprep.subr.mxu0 %v1677
  %1856 = vmatpush1.msra.mxu0 %v1676
  %1857 = vmatprep.subr.mxu0 %v1669
  %1858 = vmatpush1.msra.mxu0 %v1668
  %1859 = vmatprep.subr.mxu0 %v1661
  %1860 = vmatpush1.msra.mxu0 %v1660
  %1861 = vmatprep.subr.mxu0 %v1653
  %1862 = vmatpush1.msra.mxu0 %v1652
  %1863 = vmatprep.subr.mxu0 %v1645
  %1864 = vmatpush1.msra.mxu0 %v1644
  %1865 = vmatprep.subr.mxu0 %v1637
  %1866 = vmatpush1.msra.mxu0 %v1636
  %1867 = vmatprep.subr.mxu0 %v1629
  %1868 = vmatpush1.msra.mxu0 %v1628
  %1869 = vmatprep.subr.mxu0 %v1621
  %1870 = vmatpush1.msra.mxu0 %v1620
  %1871 = vmatprep.subr.mxu0 %v1613
  %1872 = vmatpush1.msra.mxu0 %v1612
  %1873 = vmatprep.subr.mxu0 %v1605
  %1874 = vmatpush1.msra.mxu0 %v1604
  %1875 = vmatprep.subr.mxu0 %v1597
  %1876 = vmatpush1.msra.mxu0 %v1596
  %1877 = vmatprep.subr.mxu0 %v1589
  %1878 = vmatpush1.msra.mxu0 %v1588
  %1879 = vmatprep.subr.mxu0 %v1581
  %1880 = vmatpush1.msra.mxu0 %v1580
  %1881 = vmatprep.subr.mxu0 %v1573
  %1882 = vmatpush1.msra.mxu0 %v1572
  %1883 = vmatprep.subr.mxu0 %v1565
  %1884 = vmatpush1.msra.mxu0 %v1564
  %1885 = vmatprep.subr.mxu0 0.0
  %1886 = vmatpush2.msra.mxu0 0.0
  %1887 = vmatprep.subr.mxu0 0.0
  %1888 = vmatpush2.msra.mxu0 0.0
  %1889 = vmatprep.subr.mxu0 0.0
  %1890 = vmatpush2.msra.mxu0 0.0
  %1891 = vmatprep.subr.mxu0 0.0
  %1892 = vmatpush2.msra.mxu0 0.0
  %1893 = vmatprep.subr.mxu0 0.0
  %1894 = vmatpush2.msra.mxu0 0.0
  %1895 = vmatprep.subr.mxu0 %v1773
  %1896 = vmatpush2.msra.mxu0 %v1772
  %1897 = vmatprep.subr.mxu0 %v1765
  %1898 = vmatpush2.msra.mxu0 %v1764
  %1899 = vmatprep.subr.mxu0 %v1757
  %1900 = vmatpush2.msra.mxu0 %v1756
  %1901 = vmatprep.subr.mxu0 %v1749
  %1902 = vmatpush2.msra.mxu0 %v1748
  %1903 = vmatprep.subr.mxu0 %v1741
  %1904 = vmatpush2.msra.mxu0 %v1740
  %1905 = vmatprep.subr.mxu0 %v1733
  %1906 = vmatpush2.msra.mxu0 %v1732
  %1907 = vmatprep.subr.mxu0 %v1725
  %1908 = vmatpush2.msra.mxu0 %v1724
  %1909 = vmatprep.subr.mxu0 %v1717
  %1910 = vmatpush2.msra.mxu0 %v1716
  %1911 = vmatprep.subr.mxu0 %v1709
  %1912 = vmatpush2.msra.mxu0 %v1708
  %1913 = vmatprep.subr.mxu0 %v1701
  %1914 = vmatpush2.msra.mxu0 %v1700
  %1915 = vmatprep.subr.mxu0 %v1693
  %1916 = vmatpush2.msra.mxu0 %v1692
  %1917 = vmatprep.mubr.f32.mxu0 %v1780
  %1918 = vmatmul.mubr.f32.gmra.mxu0 %v1560
  %v1919 = vpop.f32.mrf.mxu0
  %v1920 = vadd.f32 0.0, %v1919
  %v1921 = vpop.f32.mrf.mxu0
  %v1922 = vadd.f32 0.0, %v1921
  %1923 = vdwg.mxu0
  %1924 = vmatprep.subr.mxu0 %v1687
  %1925 = vmatpush1.msra.mxu0 %v1686
  %1926 = vmatprep.subr.mxu0 %v1679
  %1927 = vmatpush1.msra.mxu0 %v1678
  %1928 = vmatprep.subr.mxu0 %v1671
  %1929 = vmatpush1.msra.mxu0 %v1670
  %1930 = vmatprep.subr.mxu0 %v1663
  %1931 = vmatpush1.msra.mxu0 %v1662
  %1932 = vmatprep.subr.mxu0 %v1655
  %1933 = vmatpush1.msra.mxu0 %v1654
  %1934 = vmatprep.subr.mxu0 %v1647
  %1935 = vmatpush1.msra.mxu0 %v1646
  %1936 = vmatprep.subr.mxu0 %v1639
  %1937 = vmatpush1.msra.mxu0 %v1638
  %1938 = vmatprep.subr.mxu0 %v1631
  %1939 = vmatpush1.msra.mxu0 %v1630
  %1940 = vmatprep.subr.mxu0 %v1623
  %1941 = vmatpush1.msra.mxu0 %v1622
  %1942 = vmatprep.subr.mxu0 %v1615
  %1943 = vmatpush1.msra.mxu0 %v1614
  %1944 = vmatprep.subr.mxu0 %v1607
  %1945 = vmatpush1.msra.mxu0 %v1606
  %1946 = vmatprep.subr.mxu0 %v1599
  %1947 = vmatpush1.msra.mxu0 %v1598
  %1948 = vmatprep.subr.mxu0 %v1591
  %1949 = vmatpush1.msra.mxu0 %v1590
  %1950 = vmatprep.subr.mxu0 %v1583
  %1951 = vmatpush1.msra.mxu0 %v1582
  %1952 = vmatprep.subr.mxu0 %v1575
  %1953 = vmatpush1.msra.mxu0 %v1574
  %1954 = vmatprep.subr.mxu0 %v1567
  %1955 = vmatpush1.msra.mxu0 %v1566
  %1956 = vmatprep.subr.mxu0 0.0
  %1957 = vmatpush2.msra.mxu0 0.0
  %1958 = vmatprep.subr.mxu0 0.0
  %1959 = vmatpush2.msra.mxu0 0.0
  %1960 = vmatprep.subr.mxu0 0.0
  %1961 = vmatpush2.msra.mxu0 0.0
  %1962 = vmatprep.subr.mxu0 0.0
  %1963 = vmatpush2.msra.mxu0 0.0
  %1964 = vmatprep.subr.mxu0 0.0
  %1965 = vmatpush2.msra.mxu0 0.0
  %1966 = vmatprep.subr.mxu0 %v1775
  %1967 = vmatpush2.msra.mxu0 %v1774
  %1968 = vmatprep.subr.mxu0 %v1767
  %1969 = vmatpush2.msra.mxu0 %v1766
  %1970 = vmatprep.subr.mxu0 %v1759
  %1971 = vmatpush2.msra.mxu0 %v1758
  %1972 = vmatprep.subr.mxu0 %v1751
  %1973 = vmatpush2.msra.mxu0 %v1750
  %1974 = vmatprep.subr.mxu0 %v1743
  %1975 = vmatpush2.msra.mxu0 %v1742
  %1976 = vmatprep.subr.mxu0 %v1735
  %1977 = vmatpush2.msra.mxu0 %v1734
  %1978 = vmatprep.subr.mxu0 %v1727
  %1979 = vmatpush2.msra.mxu0 %v1726
  %1980 = vmatprep.subr.mxu0 %v1719
  %1981 = vmatpush2.msra.mxu0 %v1718
  %1982 = vmatprep.subr.mxu0 %v1711
  %1983 = vmatpush2.msra.mxu0 %v1710
  %1984 = vmatprep.subr.mxu0 %v1703
  %1985 = vmatpush2.msra.mxu0 %v1702
  %1986 = vmatprep.subr.mxu0 %v1695
  %1987 = vmatpush2.msra.mxu0 %v1694
  %1988 = vmatprep.mubr.f32.mxu0 %v1780
  %1989 = vmatmul.mubr.f32.gmra.mxu0 %v1560
  %v1990 = vpop.f32.mrf.mxu0
  %v1991 = vadd.f32 0.0, %v1990
  %v1992 = vpop.f32.mrf.mxu0
  %v1993 = vadd.f32 0.0, %v1992
  %1994 = vdwg.mxu0
  %1995 = vmatprep.subr.mxu0 %v1689
  %1996 = vmatpush1.msra.mxu0 %v1688
  %1997 = vmatprep.subr.mxu0 %v1681
  %1998 = vmatpush1.msra.mxu0 %v1680
  %1999 = vmatprep.subr.mxu0 %v1673
  %2000 = vmatpush1.msra.mxu0 %v1672
  %2001 = vmatprep.subr.mxu0 %v1665
  %2002 = vmatpush1.msra.mxu0 %v1664
  %2003 = vmatprep.subr.mxu0 %v1657
  %2004 = vmatpush1.msra.mxu0 %v1656
  %2005 = vmatprep.subr.mxu0 %v1649
  %2006 = vmatpush1.msra.mxu0 %v1648
  %2007 = vmatprep.subr.mxu0 %v1641
  %2008 = vmatpush1.msra.mxu0 %v1640
  %2009 = vmatprep.subr.mxu0 %v1633
  %2010 = vmatpush1.msra.mxu0 %v1632
  %2011 = vmatprep.subr.mxu0 %v1625
  %2012 = vmatpush1.msra.mxu0 %v1624
  %2013 = vmatprep.subr.mxu0 %v1617
  %2014 = vmatpush1.msra.mxu0 %v1616
  %2015 = vmatprep.subr.mxu0 %v1609
  %2016 = vmatpush1.msra.mxu0 %v1608
  %2017 = vmatprep.subr.mxu0 %v1601
  %2018 = vmatpush1.msra.mxu0 %v1600
  %2019 = vmatprep.subr.mxu0 %v1593
  %2020 = vmatpush1.msra.mxu0 %v1592
  %2021 = vmatprep.subr.mxu0 %v1585
  %2022 = vmatpush1.msra.mxu0 %v1584
  %2023 = vmatprep.subr.mxu0 %v1577
  %2024 = vmatpush1.msra.mxu0 %v1576
  %2025 = vmatprep.subr.mxu0 %v1569
  %2026 = vmatpush1.msra.mxu0 %v1568
  %2027 = vmatprep.subr.mxu0 0.0
  %2028 = vmatpush2.msra.mxu0 0.0
  %2029 = vmatprep.subr.mxu0 0.0
  %2030 = vmatpush2.msra.mxu0 0.0
  %2031 = vmatprep.subr.mxu0 0.0
  %2032 = vmatpush2.msra.mxu0 0.0
  %2033 = vmatprep.subr.mxu0 0.0
  %2034 = vmatpush2.msra.mxu0 0.0
  %2035 = vmatprep.subr.mxu0 0.0
  %2036 = vmatpush2.msra.mxu0 0.0
  %2037 = vmatprep.subr.mxu0 %v1777
  %2038 = vmatpush2.msra.mxu0 %v1776
  %2039 = vmatprep.subr.mxu0 %v1769
  %2040 = vmatpush2.msra.mxu0 %v1768
  %2041 = vmatprep.subr.mxu0 %v1761
  %2042 = vmatpush2.msra.mxu0 %v1760
  %2043 = vmatprep.subr.mxu0 %v1753
  %2044 = vmatpush2.msra.mxu0 %v1752
  %2045 = vmatprep.subr.mxu0 %v1745
  %2046 = vmatpush2.msra.mxu0 %v1744
  %2047 = vmatprep.subr.mxu0 %v1737
  %2048 = vmatpush2.msra.mxu0 %v1736
  %2049 = vmatprep.subr.mxu0 %v1729
  %2050 = vmatpush2.msra.mxu0 %v1728
  %2051 = vmatprep.subr.mxu0 %v1721
  %2052 = vmatpush2.msra.mxu0 %v1720
  %2053 = vmatprep.subr.mxu0 %v1713
  %2054 = vmatpush2.msra.mxu0 %v1712
  %2055 = vmatprep.subr.mxu0 %v1705
  %2056 = vmatpush2.msra.mxu0 %v1704
  %2057 = vmatprep.subr.mxu0 %v1697
  %2058 = vmatpush2.msra.mxu0 %v1696
  %2059 = vmatprep.mubr.f32.mxu0 %v1780
  %2060 = vmatmul.mubr.f32.gmra.mxu0 %v1560
  %v2061 = vpop.f32.mrf.mxu0
  %v2062 = vadd.f32 0.0, %v2061
  %v2063 = vpop.f32.mrf.mxu0
  %v2064 = vadd.f32 0.0, %v2063
  %2065 = vdwg.mxu0
  %2066 = vst [vmem:[%s2] sm:$0xff] %v1849
  %2067 = vst [vmem:[%s2 + $0x8] sm:$0xff] %v1851
  %2068 = vst [vmem:[%s2 + $0x10] sm:$0xff] %v1920
  %2069 = vst [vmem:[%s2 + $0x18] sm:$0xff] %v1922
  %2070 = vst [vmem:[%s2 + $0x20] sm:$0xff] %v1991
  %2071 = vst [vmem:[%s2 + $0x28] sm:$0xff] %v1993
  %2072 = vst [vmem:[%s2 + $0x30] sm:$0xff] %v2062
  %2073 = vst [vmem:[%s2 + $0x38] sm:$0xff] %v2064
  // Predicated region
  $region10: #{conv3d_pallas.1} parent=0 // pred_check
    _
  $region11: #{conv3d_pallas.1} parent=0 // pred_check_branch
    %2075 = sbr.rel (0) target = $region13
  $region12: #{conv3d_pallas.1} parent=0 // pred_region
    _
  $region13: #{conv3d_pallas.1} parent=0 // pred_fallthru
    _
  // Predicated region
  $region14: #{conv3d_pallas.1} parent=0 // pred_check
    _
  $region15: #{conv3d_pallas.1} parent=0 // pred_check_branch
    %2077 = sbr.rel (0) target = $region17
  $region16: #{conv3d_pallas.1} parent=0 // pred_region
    _
  $region17: #{conv3d_pallas.1} parent=0 // pred_fallthru
    _

</llo_original>
